<compile_context>
chip_gen: v5e
topology: v5e:2x2
jax: 0.10.0
libtpu: 0.0.40
codegen_flags: <defaults>
</compile_context>

<pallas_src>
import functools

import jax
import jax.numpy as jnp
from jax.experimental import pallas as pl
from jax.experimental.pallas import tpu as pltpu


# ----------------------------------------------------------------------------
# Kernels: 1x1 conv as  W @ X  with the pixel axis on lanes.
#   x refs:  (1, Cin, tp)   (batch-sliced, pixel-tiled)
#   w refs:  (Cout, Cin)
#   b ref :  (Cout, 1)      (f32)
#   o ref :  (1, Cout, tp)
# ----------------------------------------------------------------------------

def _conv1x1_kernel(x_ref, w_ref, b_ref, o_ref, *, leaky):
    y = jnp.dot(w_ref[...], x_ref[0], preferred_element_type=jnp.float32)
    y = y + b_ref[...]
    if leaky:
        y = jnp.where(y >= 0.0, y, 0.2 * y)          # LeakyReLU(0.2)
    o_ref[0] = y.astype(o_ref.dtype)


def _conv1x1_dual_kernel(xa_ref, xb_ref, wa_ref, wb_ref, b_ref, o_ref, *, leaky):
    # Fused cat([xa, xb], channel) @ W^T  ==  W_a @ xa + W_b @ xb
    y = jnp.dot(wa_ref[...], xa_ref[0], preferred_element_type=jnp.float32)
    y = y + jnp.dot(wb_ref[...], xb_ref[0], preferred_element_type=jnp.float32)
    y = y + b_ref[...]
    if leaky:
        y = jnp.where(y >= 0.0, y, 0.2 * y)
    o_ref[0] = y.astype(o_ref.dtype)


def _conv1x1_residual_kernel(xa_ref, xb_ref, w_ref, b_ref, o_ref, *, leaky):
    # Fused residual:  W @ (xa + xb) + b
    y = jnp.dot(w_ref[...], xa_ref[0] + xb_ref[0],
                preferred_element_type=jnp.float32)
    y = y + b_ref[...]
    if leaky:
        y = jnp.where(y >= 0.0, y, 0.2 * y)
    o_ref[0] = y.astype(o_ref.dtype)


# ----------------------------------------------------------------------------
# Wrapper: tiling / specs / compiler params shared by all three kernels.
# ----------------------------------------------------------------------------

_ACT_VMEM_BUDGET = 16 * 1024 * 1024   # double-buffered activation blocks
_VMEM_LIMIT = 40 * 1024 * 1024        # fits v7x's 64 MiB physical VMEM
_TP_MAX = 4096


def _pick_tile_p(p, row_bytes):
    """Largest pixel-tile (multiple of 128, or the full extent) within budget."""
    tp = _ACT_VMEM_BUDGET // max(row_bytes, 1)
    tp = min(tp, _TP_MAX)
    if tp >= p:
        return p                      # whole axis: full-extent block is legal
    return max(128, (tp // 128) * 128)


def _conv1x1_call(kernel, xs, ws, b, cout, *, leaky):
    """Run a fused 1x1-conv kernel on pixel-major tensors.

    xs : list of (N, Cin_i, P) activations
    ws : list of (Cout, Cin_i) weights (one per x)
    b  : (Cout,) bias
    """
    n, _, p = xs[0].shape
    dtype = xs[0].dtype
    itemsize = jnp.dtype(dtype).itemsize
    cins = [int(x.shape[1]) for x in xs]

    # Bytes per pixel column across all double-buffered in/out blocks.
    row_bytes = 2 * (sum(cins) + cout) * itemsize
    tp = _pick_tile_p(p, row_bytes)
    grid = (n, pl.cdiv(p, tp))

    b2 = b.reshape(cout, 1).astype(jnp.float32)

    x_specs = [pl.BlockSpec((1, ci, tp), lambda bi, pi: (bi, 0, pi))
               for ci in cins]
    w_specs = [pl.BlockSpec((cout, ci), lambda bi, pi: (0, 0)) for ci in cins]
    b_spec = pl.BlockSpec((cout, 1), lambda bi, pi: (0, 0))
    out_spec = pl.BlockSpec((1, cout, tp), lambda bi, pi: (bi, 0, pi))

    flops = 2 * n * p * cout * sum(cins)
    bytes_accessed = (sum(int(x.size) * itemsize for x in xs)
                      + sum(int(w.size) * int(w.dtype.itemsize) for w in ws)
                      + int(b2.size) * 4
                      + n * cout * p * itemsize)
    cost = pl.CostEstimate(flops=flops, transcendentals=0,
                           bytes_accessed=int(bytes_accessed))

    return pl.pallas_call(
        functools.partial(kernel, leaky=leaky),
        out_shape=jax.ShapeDtypeStruct((n, cout, p), dtype),
        grid=grid,
        in_specs=x_specs + w_specs + [b_spec],
        out_specs=out_spec,
        compiler_params=pltpu.CompilerParams(
            dimension_semantics=("parallel", "parallel"),
            vmem_limit_bytes=_VMEM_LIMIT,
        ),
        cost_estimate=cost,
    )(*xs, *ws, b2)


def conv1x1(x, w, b, *, leaky):
    """y = act(W @ x + b) on pixel-major x: (N, Cin, P) -> (N, Cout, P)."""
    return _conv1x1_call(_conv1x1_kernel, [x], [w], b, int(w.shape[0]),
                         leaky=leaky)


def conv1x1_dual(xa, xb, wa, wb, b, *, leaky):
    """y = act(W_a @ xa + W_b @ xb + b)  (== conv on channel-concat of xa,xb)."""
    return _conv1x1_call(_conv1x1_dual_kernel, [xa, xb], [wa, wb], b,
                         int(wa.shape[0]), leaky=leaky)


def conv1x1_residual(xa, xb, w, b, *, leaky):
    """y = act(W @ (xa + xb) + b)  (fused residual add)."""
    return _conv1x1_call(_conv1x1_residual_kernel, [xa, xb], [w, w], b,
                         int(w.shape[0]), leaky=leaky)


# Note: the residual kernel only uses its single weight ref once; pass w twice
# only to reuse the shared wrapper's spec plumbing.
def _conv1x1_residual_call(xa, xb, w, b, *, leaky):
    n, _, p = xa.shape
    dtype = xa.dtype
    itemsize = jnp.dtype(dtype).itemsize
    cin = int(xa.shape[1])
    cout = int(w.shape[0])

    row_bytes = 2 * (2 * cin + cout) * itemsize
    tp = _pick_tile_p(p, row_bytes)
    grid = (n, pl.cdiv(p, tp))
    b2 = b.reshape(cout, 1).astype(jnp.float32)

    flops = 2 * n * p * cout * cin + n * p * cin
    bytes_accessed = (2 * n * cin * p + n * cout * p) * itemsize + w.size * 4
    cost = pl.CostEstimate(flops=flops, transcendentals=0,
                           bytes_accessed=int(bytes_accessed))

    return pl.pallas_call(
        functools.partial(_conv1x1_residual_kernel, leaky=leaky),
        out_shape=jax.ShapeDtypeStruct((n, cout, p), dtype),
        grid=grid,
        in_specs=[
            pl.BlockSpec((1, cin, tp), lambda bi, pi: (bi, 0, pi)),
            pl.BlockSpec((1, cin, tp), lambda bi, pi: (bi, 0, pi)),
            pl.BlockSpec((cout, cin), lambda bi, pi: (0, 0)),
            pl.BlockSpec((cout, 1), lambda bi, pi: (0, 0)),
        ],
        out_specs=pl.BlockSpec((1, cout, tp), lambda bi, pi: (bi, 0, pi)),
        compiler_params=pltpu.CompilerParams(
            dimension_semantics=("parallel", "parallel"),
            vmem_limit_bytes=_VMEM_LIMIT,
        ),
        cost_estimate=cost,
    )(xa, xb, w, b2)


# ----------------------------------------------------------------------------
# Module forward (NCHW at the interface; pixel-major (N, C, P) internally).
# ----------------------------------------------------------------------------

def fourier_unit(x1, w_fft, b_fft, h, w):
    """FourierUnit.forward on pixel-major x1: (N, half, H*W) -> same shape."""
    n, half, _ = x1.shape
    # TODO(synk): rfftn/irfftn have no Pallas TPU primitive; FFTs stay in XLA.
    fx = jnp.fft.rfftn(x1.reshape(n, half, h, w), axes=(-2, -1), norm="ortho")
    wf = fx.shape[-1]
    pf = h * wf
    re = fx.real.reshape(n, half, pf)
    im = fx.imag.reshape(n, half, pf)

    # conv on cat(re, im) fused in-kernel (weight split along Cin), + LeakyReLU.
    y = conv1x1_dual(re, im, w_fft[:, :half], w_fft[:, half:], b_fft,
                     leaky=True)                       # (N, 2*half, Pf)

    re_o = y[:, :half, :].reshape(n, half, h, wf)
    im_o = y[:, half:, :].reshape(n, half, h, wf)
    out = jnp.fft.irfftn(jax.lax.complex(re_o, im_o), s=(h, w),
                         axes=(-2, -1), norm="ortho")  # (N, half, H, W)
    return out.reshape(n, half, h * w)


def spectral_transform(x, params):
    """SpectralTransform.forward for NCHW input x."""
    n, c, h, w = x.shape
    half = c // 2
    p = h * w

    x3 = x.reshape(n, c, p)                                         # (N, C, P)
    w_before = params["w_before"].reshape(half, c)
    w_fft = params["w_fft"].reshape(2 * half, 2 * half)
    w_after = params["w_after"].reshape(c, half)

    # conv_before_fft: Conv2d(C -> C/2, 1x1) + LeakyReLU(0.2)
    x1 = conv1x1(x3, w_before, params["b_before"], leaky=True)      # (N, C/2, P)

    # FourierUnit(C/2)
    fft_out = fourier_unit(x1, w_fft, params["b_fft"], h, w)        # (N, C/2, P)

    # conv_after_fft on (fft_out + x1): residual add fused into the kernel.
    out = _conv1x1_residual_call(fft_out, x1, w_after, params["b_after"],
                                 leaky=False)                       # (N, C, P)
    return out.reshape(n, c, h, w)


def init_params(key, embed_dim):
    half = embed_dim // 2
    k1, k2, k3, k4, k5, k6 = jax.random.split(key, 6)
    scale = 0.1
    return {
        # conv_before_fft.0 : Conv2d(embed_dim, embed_dim//2, 1)
        "w_before": scale * jax.random.normal(k1, (half, embed_dim, 1, 1), jnp.float32),
        "b_before": scale * jax.random.normal(k2, (half,), jnp.float32),
        # fu.conv_layer : Conv2d(2*half, 2*half, 1)
        "w_fft": scale * jax.random.normal(k3, (2 * half, 2 * half, 1, 1), jnp.float32),
        "b_fft": scale * jax.random.normal(k4, (2 * half,), jnp.float32),
        # conv_after_fft : Conv2d(embed_dim//2, embed_dim, 1)
        "w_after": scale * jax.random.normal(k5, (embed_dim, half, 1, 1), jnp.float32),
        "b_after": scale * jax.random.normal(k6, (embed_dim,), jnp.float32),
    }


if __name__ == "__main__":
    key = jax.random.PRNGKey(0)
    kx, kp = jax.random.split(key)

    batch, embed_dim, h, w = 2, 4, 16, 16
    x = jax.random.normal(kx, (batch, embed_dim, h, w), jnp.float32)
    params = init_params(kp, embed_dim)

    out = jax.jit(spectral_transform)(x, params)
    out = jax.block_until_ready(out)

    assert out.shape == (batch, embed_dim, h, w), out.shape
    assert out.dtype == jnp.float32
    assert bool(jnp.all(jnp.isfinite(out)))
    print("KERNEL_OK")
</pallas_src>

<mosaic_0001>
module attributes {stable_mosaic.version = 11 : i64} {
  func.func @_conv1x1_kernel(%arg0: i32, %arg1: i32, %arg2: memref<1x4x256xf32, #tpu.memory_space<vmem>>, %arg3: memref<2x4xf32, #tpu.memory_space<vmem>>, %arg4: memref<2x1xf32, #tpu.memory_space<vmem>>, %arg5: memref<1x2x256xf32, #tpu.memory_space<vmem>>) attributes {dimension_semantics = [#tpu.dimension_semantics<parallel>, #tpu.dimension_semantics<parallel>], iteration_bounds = array<i64: 2, 1>, scalar_prefetch = 0 : i64, scratch_operands = 0 : i64, tpu.core_type = #tpu.core_type<tc>, window_params = [{transform_indices = @transform_0, window_bounds = array<i64: 1, 4, 256>}, {pipeline_mode = #tpu.pipeline_mode<synchronous>, transform_indices = @transform_1, window_bounds = array<i64: 2, 4>}, {pipeline_mode = #tpu.pipeline_mode<synchronous>, transform_indices = @transform_2, window_bounds = array<i64: 2, 1>}, {transform_indices = @transform_3, window_bounds = array<i64: 1, 2, 256>}]} {
    %c0 = arith.constant 0 : index
    %c0_0 = arith.constant 0 : index
    %0 = vector.load %arg3[%c0, %c0_0] : memref<2x4xf32, #tpu.memory_space<vmem>>, vector<2x4xf32>
    %c0_1 = arith.constant 0 : index
    %c0_2 = arith.constant 0 : index
    %c0_3 = arith.constant 0 : index
    %1 = vector.load %arg2[%c0_1, %c0_2, %c0_3] : memref<1x4x256xf32, #tpu.memory_space<vmem>>, vector<1x4x256xf32>
    %2 = vector.shape_cast %1 : vector<1x4x256xf32> to vector<4x256xf32>
    %cst = arith.constant dense<0.000000e+00> : vector<2x256xf32>
    %3 = tpu.matmul %0, %2, %cst {dimension_numbers = #tpu.dot_dimension_numbers<[1], [0], [0], [1], [0, 0, 1, 1], [], []>} : vector<2x4xf32>, vector<4x256xf32>, vector<2x256xf32> -> vector<2x256xf32>
    %c0_4 = arith.constant 0 : index
    %c0_5 = arith.constant 0 : index
    %4 = vector.load %arg4[%c0_4, %c0_5] : memref<2x1xf32, #tpu.memory_space<vmem>>, vector<2x1xf32>
    %5 = vector.broadcast %4 : vector<2x1xf32> to vector<2x256xf32>
    %6 = arith.addf %3, %5 : vector<2x256xf32>
    %cst_6 = arith.constant 0.000000e+00 : f32
    %7 = vector.broadcast %cst_6 : f32 to vector<2x256xf32>
    %8 = arith.cmpf oge, %6, %7 : vector<2x256xf32>
    %cst_7 = arith.constant 2.000000e-01 : f32
    %9 = vector.broadcast %cst_7 : f32 to vector<2x256xf32>
    %10 = arith.mulf %9, %6 : vector<2x256xf32>
    %11 = arith.select %8, %6, %10 : vector<2x256xi1>, vector<2x256xf32>
    %c0_8 = arith.constant 0 : index
    %c0_9 = arith.constant 0 : index
    %c0_10 = arith.constant 0 : index
    %12 = vector.load %arg5[%c0_8, %c0_9, %c0_10] : memref<1x2x256xf32, #tpu.memory_space<vmem>>, vector<1x2x256xf32>
    %13 = vector.shape_cast %12 : vector<1x2x256xf32> to vector<2x256xf32>
    %14 = vector.shape_cast %11 : vector<2x256xf32> to vector<1x2x256xf32>
    tpu.vector_store %arg5[%c0_8, %c0_9, %c0_10], %14 {strides = array<i32>} : memref<1x2x256xf32, #tpu.memory_space<vmem>>, vector<1x2x256xf32>,
    return
  }
  func.func @transform_0(%arg0: i32, %arg1: i32) -> (i32, i32, i32) {
    %c0_i32 = arith.constant 0 : i32
    %c0_i32_0 = arith.constant 0 : i32
    return %arg0, %c0_i32, %arg1 : i32, i32, i32
  }
  func.func @transform_1(%arg0: i32, %arg1: i32) -> (i32, i32) {
    %c0_i32 = arith.constant 0 : i32
    %c0_i32_0 = arith.constant 0 : i32
    %c0_i32_1 = arith.constant 0 : i32
    return %c0_i32, %c0_i32_0 : i32, i32
  }
  func.func @transform_2(%arg0: i32, %arg1: i32) -> (i32, i32) {
    %c0_i32 = arith.constant 0 : i32
    %c0_i32_0 = arith.constant 0 : i32
    %c0_i32_1 = arith.constant 0 : i32
    return %c0_i32, %c0_i32_0 : i32, i32
  }
  func.func @transform_3(%arg0: i32, %arg1: i32) -> (i32, i32, i32) {
    %c0_i32 = arith.constant 0 : i32
    %c0_i32_0 = arith.constant 0 : i32
    return %arg0, %c0_i32, %arg1 : i32, i32, i32
  }
}

module attributes {stable_mosaic.version = 11 : i64} {
  func.func @_conv1x1_dual_kernel(%arg0: i32, %arg1: i32, %arg2: memref<1x2x144xf32, #tpu.memory_space<vmem>>, %arg3: memref<1x2x144xf32, #tpu.memory_space<vmem>>, %arg4: memref<4x2xf32, #tpu.memory_space<vmem>>, %arg5: memref<4x2xf32, #tpu.memory_space<vmem>>, %arg6: memref<4x1xf32, #tpu.memory_space<vmem>>, %arg7: memref<1x4x144xf32, #tpu.memory_space<vmem>>) attributes {dimension_semantics = [#tpu.dimension_semantics<parallel>, #tpu.dimension_semantics<parallel>], iteration_bounds = array<i64: 2, 1>, scalar_prefetch = 0 : i64, scratch_operands = 0 : i64, tpu.core_type = #tpu.core_type<tc>, window_params = [{transform_indices = @transform_0, window_bounds = array<i64: 1, 2, 144>}, {transform_indices = @transform_1, window_bounds = array<i64: 1, 2, 144>}, {pipeline_mode = #tpu.pipeline_mode<synchronous>, transform_indices = @transform_2, window_bounds = array<i64: 4, 2>}, {pipeline_mode = #tpu.pipeline_mode<synchronous>, transform_indices = @transform_3, window_bounds = array<i64: 4, 2>}, {pipeline_mode = #tpu.pipeline_mode<synchronous>, transform_indices = @transform_4, window_bounds = array<i64: 4, 1>}, {transform_indices = @transform_5, window_bounds = array<i64: 1, 4, 144>}]} {
    %c0 = arith.constant 0 : index
    %c0_0 = arith.constant 0 : index
    %0 = vector.load %arg4[%c0, %c0_0] : memref<4x2xf32, #tpu.memory_space<vmem>>, vector<4x2xf32>
    %c0_1 = arith.constant 0 : index
    %c0_2 = arith.constant 0 : index
    %c0_3 = arith.constant 0 : index
    %1 = vector.load %arg2[%c0_1, %c0_2, %c0_3] : memref<1x2x144xf32, #tpu.memory_space<vmem>>, vector<1x2x144xf32>
    %2 = vector.shape_cast %1 : vector<1x2x144xf32> to vector<2x144xf32>
    %cst = arith.constant dense<0.000000e+00> : vector<4x144xf32>
    %3 = tpu.matmul %0, %2, %cst {dimension_numbers = #tpu.dot_dimension_numbers<[1], [0], [0], [1], [0, 0, 1, 1], [], []>} : vector<4x2xf32>, vector<2x144xf32>, vector<4x144xf32> -> vector<4x144xf32>
    %c0_4 = arith.constant 0 : index
    %c0_5 = arith.constant 0 : index
    %4 = vector.load %arg5[%c0_4, %c0_5] : memref<4x2xf32, #tpu.memory_space<vmem>>, vector<4x2xf32>
    %c0_6 = arith.constant 0 : index
    %c0_7 = arith.constant 0 : index
    %c0_8 = arith.constant 0 : index
    %5 = vector.load %arg3[%c0_6, %c0_7, %c0_8] : memref<1x2x144xf32, #tpu.memory_space<vmem>>, vector<1x2x144xf32>
    %6 = vector.shape_cast %5 : vector<1x2x144xf32> to vector<2x144xf32>
    %cst_9 = arith.constant dense<0.000000e+00> : vector<4x144xf32>
    %7 = tpu.matmul %4, %6, %cst_9 {dimension_numbers = #tpu.dot_dimension_numbers<[1], [0], [0], [1], [0, 0, 1, 1], [], []>} : vector<4x2xf32>, vector<2x144xf32>, vector<4x144xf32> -> vector<4x144xf32>
    %8 = arith.addf %3, %7 : vector<4x144xf32>
    %c0_10 = arith.constant 0 : index
    %c0_11 = arith.constant 0 : index
    %9 = vector.load %arg6[%c0_10, %c0_11] : memref<4x1xf32, #tpu.memory_space<vmem>>, vector<4x1xf32>
    %10 = vector.broadcast %9 : vector<4x1xf32> to vector<4x144xf32>
    %11 = arith.addf %8, %10 : vector<4x144xf32>
    %cst_12 = arith.constant 0.000000e+00 : f32
    %12 = vector.broadcast %cst_12 : f32 to vector<4x144xf32>
    %13 = arith.cmpf oge, %11, %12 : vector<4x144xf32>
    %cst_13 = arith.constant 2.000000e-01 : f32
    %14 = vector.broadcast %cst_13 : f32 to vector<4x144xf32>
    %15 = arith.mulf %14, %11 : vector<4x144xf32>
    %16 = arith.select %13, %11, %15 : vector<4x144xi1>, vector<4x144xf32>
    %c0_14 = arith.constant 0 : index
    %c0_15 = arith.constant 0 : index
    %c0_16 = arith.constant 0 : index
    %17 = vector.load %arg7[%c0_14, %c0_15, %c0_16] : memref<1x4x144xf32, #tpu.memory_space<vmem>>, vector<1x4x144xf32>
    %18 = vector.shape_cast %17 : vector<1x4x144xf32> to vector<4x144xf32>
    %19 = vector.shape_cast %16 : vector<4x144xf32> to vector<1x4x144xf32>
    tpu.vector_store %arg7[%c0_14, %c0_15, %c0_16], %19 {strides = array<i32>} : memref<1x4x144xf32, #tpu.memory_space<vmem>>, vector<1x4x144xf32>,
    return
  }
  func.func @transform_0(%arg0: i32, %arg1: i32) -> (i32, i32, i32) {
    %c0_i32 = arith.constant 0 : i32
    %c0_i32_0 = arith.constant 0 : i32
    return %arg0, %c0_i32, %arg1 : i32, i32, i32
  }
  func.func @transform_1(%arg0: i32, %arg1: i32) -> (i32, i32, i32) {
    %c0_i32 = arith.constant 0 : i32
    %c0_i32_0 = arith.constant 0 : i32
    return %arg0, %c0_i32, %arg1 : i32, i32, i32
  }
  func.func @transform_2(%arg0: i32, %arg1: i32) -> (i32, i32) {
    %c0_i32 = arith.constant 0 : i32
    %c0_i32_0 = arith.constant 0 : i32
    %c0_i32_1 = arith.constant 0 : i32
    return %c0_i32, %c0_i32_0 : i32, i32
  }
  func.func @transform_3(%arg0: i32, %arg1: i32) -> (i32, i32) {
    %c0_i32 = arith.constant 0 : i32
    %c0_i32_0 = arith.constant 0 : i32
    %c0_i32_1 = arith.constant 0 : i32
    return %c0_i32, %c0_i32_0 : i32, i32
  }
  func.func @transform_4(%arg0: i32, %arg1: i32) -> (i32, i32) {
    %c0_i32 = arith.constant 0 : i32
    %c0_i32_0 = arith.constant 0 : i32
    %c0_i32_1 = arith.constant 0 : i32
    return %c0_i32, %c0_i32_0 : i32, i32
  }
  func.func @transform_5(%arg0: i32, %arg1: i32) -> (i32, i32, i32) {
    %c0_i32 = arith.constant 0 : i32
    %c0_i32_0 = arith.constant 0 : i32
    return %arg0, %c0_i32, %arg1 : i32, i32, i32
  }
}

module attributes {stable_mosaic.version = 11 : i64} {
  func.func @_conv1x1_residual_kernel(%arg0: i32, %arg1: i32, %arg2: memref<1x2x256xf32, #tpu.memory_space<vmem>>, %arg3: memref<1x2x256xf32, #tpu.memory_space<vmem>>, %arg4: memref<4x2xf32, #tpu.memory_space<vmem>>, %arg5: memref<4x1xf32, #tpu.memory_space<vmem>>, %arg6: memref<1x4x256xf32, #tpu.memory_space<vmem>>) attributes {dimension_semantics = [#tpu.dimension_semantics<parallel>, #tpu.dimension_semantics<parallel>], iteration_bounds = array<i64: 2, 1>, scalar_prefetch = 0 : i64, scratch_operands = 0 : i64, tpu.core_type = #tpu.core_type<tc>, window_params = [{transform_indices = @transform_0, window_bounds = array<i64: 1, 2, 256>}, {transform_indices = @transform_1, window_bounds = array<i64: 1, 2, 256>}, {pipeline_mode = #tpu.pipeline_mode<synchronous>, transform_indices = @transform_2, window_bounds = array<i64: 4, 2>}, {pipeline_mode = #tpu.pipeline_mode<synchronous>, transform_indices = @transform_3, window_bounds = array<i64: 4, 1>}, {transform_indices = @transform_4, window_bounds = array<i64: 1, 4, 256>}]} {
    %c0 = arith.constant 0 : index
    %c0_0 = arith.constant 0 : index
    %0 = vector.load %arg4[%c0, %c0_0] : memref<4x2xf32, #tpu.memory_space<vmem>>, vector<4x2xf32>
    %c0_1 = arith.constant 0 : index
    %c0_2 = arith.constant 0 : index
    %c0_3 = arith.constant 0 : index
    %1 = vector.load %arg2[%c0_1, %c0_2, %c0_3] : memref<1x2x256xf32, #tpu.memory_space<vmem>>, vector<1x2x256xf32>
    %2 = vector.shape_cast %1 : vector<1x2x256xf32> to vector<2x256xf32>
    %c0_4 = arith.constant 0 : index
    %c0_5 = arith.constant 0 : index
    %c0_6 = arith.constant 0 : index
    %3 = vector.load %arg3[%c0_4, %c0_5, %c0_6] : memref<1x2x256xf32, #tpu.memory_space<vmem>>, vector<1x2x256xf32>
    %4 = vector.shape_cast %3 : vector<1x2x256xf32> to vector<2x256xf32>
    %5 = arith.addf %2, %4 : vector<2x256xf32>
    %cst = arith.constant dense<0.000000e+00> : vector<4x256xf32>
    %6 = tpu.matmul %0, %5, %cst {dimension_numbers = #tpu.dot_dimension_numbers<[1], [0], [0], [1], [0, 0, 1, 1], [], []>} : vector<4x2xf32>, vector<2x256xf32>, vector<4x256xf32> -> vector<4x256xf32>
    %c0_7 = arith.constant 0 : index
    %c0_8 = arith.constant 0 : index
    %7 = vector.load %arg5[%c0_7, %c0_8] : memref<4x1xf32, #tpu.memory_space<vmem>>, vector<4x1xf32>
    %8 = vector.broadcast %7 : vector<4x1xf32> to vector<4x256xf32>
    %9 = arith.addf %6, %8 : vector<4x256xf32>
    %c0_9 = arith.constant 0 : index
    %c0_10 = arith.constant 0 : index
    %c0_11 = arith.constant 0 : index
    %10 = vector.load %arg6[%c0_9, %c0_10, %c0_11] : memref<1x4x256xf32, #tpu.memory_space<vmem>>, vector<1x4x256xf32>
    %11 = vector.shape_cast %10 : vector<1x4x256xf32> to vector<4x256xf32>
    %12 = vector.shape_cast %9 : vector<4x256xf32> to vector<1x4x256xf32>
    tpu.vector_store %arg6[%c0_9, %c0_10, %c0_11], %12 {strides = array<i32>} : memref<1x4x256xf32, #tpu.memory_space<vmem>>, vector<1x4x256xf32>,
    return
  }
  func.func @transform_0(%arg0: i32, %arg1: i32) -> (i32, i32, i32) {
    %c0_i32 = arith.constant 0 : i32
    %c0_i32_0 = arith.constant 0 : i32
    return %arg0, %c0_i32, %arg1 : i32, i32, i32
  }
  func.func @transform_1(%arg0: i32, %arg1: i32) -> (i32, i32, i32) {
    %c0_i32 = arith.constant 0 : i32
    %c0_i32_0 = arith.constant 0 : i32
    return %arg0, %c0_i32, %arg1 : i32, i32, i32
  }
  func.func @transform_2(%arg0: i32, %arg1: i32) -> (i32, i32) {
    %c0_i32 = arith.constant 0 : i32
    %c0_i32_0 = arith.constant 0 : i32
    %c0_i32_1 = arith.constant 0 : i32
    return %c0_i32, %c0_i32_0 : i32, i32
  }
  func.func @transform_3(%arg0: i32, %arg1: i32) -> (i32, i32) {
    %c0_i32 = arith.constant 0 : i32
    %c0_i32_0 = arith.constant 0 : i32
    %c0_i32_1 = arith.constant 0 : i32
    return %c0_i32, %c0_i32_0 : i32, i32
  }
  func.func @transform_4(%arg0: i32, %arg1: i32) -> (i32, i32, i32) {
    %c0_i32 = arith.constant 0 : i32
    %c0_i32_0 = arith.constant 0 : i32
    return %arg0, %c0_i32, %arg1 : i32, i32, i32
  }
}

</mosaic_0001>

<llo_original>
// kernel: spectral_transform.3
$region0: #{spectral_transform.3}
  #allocation0 [shape = 'u32[]', space=smem, size = 0x4, offset = 0x4, fixed_abs, tag = 'smem constant byte address 0x4 - core index']
  #allocation1 [shape = 'u32[72,128]{1,0:T(1,128)}', space=vmem, size = 0x9000, scoped, tag = 'internal scratch']
  %s0 = inlined_call_operand.vmem [shape: f32[2,4,256], index: 0, kind: input, shape index: {}]
  %s1 = inlined_call_operand.vmem [shape: f32[2,4], index: 1, kind: input, shape index: {}]
  %s2 = inlined_call_operand.vmem [shape: f32[2,1], index: 2, kind: input, shape index: {}]
  %s3 = inlined_call_operand.vmem [shape: f32[2,2,256], index: 3, kind: output, shape index: {}]
  %s4 = sld [smem:[#allocation0]]
  $region45: #{spectral_transform.3} parent=0
    _
  %s6 = ssub.s32 1, %s4
  %s7 = scalar_select 0, %s6, %s4
  loop: start=0, step=1, limit=4
  $region2: #{spectral_transform.3} parent=0 // loop_pre_header
    _
  $region3: #{spectral_transform.3} parent=0 // loop_header
    %s9 = sphi 0, %s13
    %p10 = scmp.ge.s32.totalorder %s9, 4
    %s16 = sphi 0, %s28
    %s17 = sphi 0, %s24
    %s18 = sphi 0, %s16
    %s19 = sphi 0, %s17
    %s20 = sphi 0, %s18
    %s21 = sphi 0, %s19
    %s33 = sphi 0, %s35
    %s36 = sphi 0, %s33
    %s37 = sphi 0, %s36
    %s53 = sphi 0, %s37
    %s57 = sphi 0, %s57
    %s59 = sphi 0, %s57
    %s60 = sphi 0, %s59
    %s74 = sphi 0, %s60
    %s78 = sphi 0, %s78
    %s80 = sphi 0, %s78
    %s81 = sphi 0, %s80
    %s95 = sphi 0, %s81
    %s103 = sphi 0, %s105
    %s106 = sphi 0, %s103
    %s107 = sphi 0, %s106
    %s123 = sphi 0, %s107
  $region4: #{spectral_transform.3} parent=0 // loop_header_branch
    %12 = sbr.rel (%p10) target = $region8
  $region5: #{spectral_transform.3} parent=0 // loop_body
    %s14 = ssub.s32 %s9, 1
    %s15 = ssub.s32 %s9, 2
    %s22 = sadd.s32 1, %s17
    %p23 = scmp.ge.s32.totalorder %s22, 1
    %s24 = scalar_select %p23, 0, %s22
    %s25 = sadd.s32 1, %s16
    %s26 = scalar_select %p23, %s25, %s16
    %p27 = scmp.ge.s32.totalorder %s26, 2
    %s28 = scalar_select %p27, 0, %s26
    %s29 = ssub.s32 %s16, %s28
    %s30 = ssub.s32 %s17, %s24
    %s31 = sor.u32 %s29, %s30
    %p32 = scmp.eq.s32.totalorder %s31, 0
    %s34 = sadd.s32 %s33, 1
    %s35 = scalar_select %p32, %s33, %s34
    %p38 = pneg %p32
    %p39 = scmp.eq.s32.totalorder %s9, 1
    %p40 = por %p38, %p39
    %p41 = scmp.ne.s32.totalorder %s33, %s36
    %p42 = scmp.eq.s32.totalorder %s9, 0
    %p43 = por %p41, %p42
    %p44 = scmp.ne.s32.totalorder %s33, %s36
    %p45 = scmp.eq.s32.totalorder %s14, 1
    %p46 = por %p44, %p45
    %p47 = scmp.ne.s32.totalorder %s36, %s37
    %p48 = scmp.eq.s32.totalorder %s14, 0
    %p49 = por %p47, %p48
    %p50 = scmp.ne.s32.totalorder %s36, %s37
    %p51 = scmp.eq.s32.totalorder %s15, 1
    %p52 = por %p50, %p51
    %p54 = scmp.ne.s32.totalorder %s37, %s53
    %p55 = scmp.eq.s32.totalorder %s15, 0
    %p56 = por %p54, %p55
    %s58 = sadd.s32 %s57, 1
    %p61 = scmp.eq.s32.totalorder %s9, 1
    %p62 = scmp.ne.s32.totalorder %s57, %s59
    %p63 = scmp.eq.s32.totalorder %s9, 0
    %p64 = por %p62, %p63
    %p65 = scmp.ne.s32.totalorder %s57, %s59
    %p66 = scmp.eq.s32.totalorder %s14, 1
    %p67 = por %p65, %p66
    %p68 = scmp.ne.s32.totalorder %s59, %s60
    %p69 = scmp.eq.s32.totalorder %s14, 0
    %p70 = por %p68, %p69
    %p71 = scmp.ne.s32.totalorder %s59, %s60
    %p72 = scmp.eq.s32.totalorder %s15, 1
    %p73 = por %p71, %p72
    %p75 = scmp.ne.s32.totalorder %s60, %s74
    %p76 = scmp.eq.s32.totalorder %s15, 0
    %p77 = por %p75, %p76
    %s79 = sadd.s32 %s78, 1
    %p82 = scmp.eq.s32.totalorder %s9, 1
    %p83 = scmp.ne.s32.totalorder %s78, %s80
    %p84 = scmp.eq.s32.totalorder %s9, 0
    %p85 = por %p83, %p84
    %p86 = scmp.ne.s32.totalorder %s78, %s80
    %p87 = scmp.eq.s32.totalorder %s14, 1
    %p88 = por %p86, %p87
    %p89 = scmp.ne.s32.totalorder %s80, %s81
    %p90 = scmp.eq.s32.totalorder %s14, 0
    %p91 = por %p89, %p90
    %p92 = scmp.ne.s32.totalorder %s80, %s81
    %p93 = scmp.eq.s32.totalorder %s15, 1
    %p94 = por %p92, %p93
    %p96 = scmp.ne.s32.totalorder %s81, %s95
    %p97 = scmp.eq.s32.totalorder %s15, 0
    %p98 = por %p96, %p97
    %s99 = ssub.s32 %s16, %s28
    %s100 = ssub.s32 %s17, %s24
    %s101 = sor.u32 %s99, %s100
    %p102 = scmp.eq.s32.totalorder %s101, 0
    %s104 = sadd.s32 %s103, 1
    %s105 = scalar_select %p102, %s103, %s104
    %p108 = pneg %p102
    %p109 = scmp.eq.s32.totalorder %s9, 1
    %p110 = por %p108, %p109
    %p111 = scmp.ne.s32.totalorder %s103, %s106
    %p112 = scmp.eq.s32.totalorder %s9, 0
    %p113 = por %p111, %p112
    %p114 = scmp.ne.s32.totalorder %s103, %s106
    %p115 = scmp.eq.s32.totalorder %s14, 1
    %p116 = por %p114, %p115
    %p117 = scmp.ne.s32.totalorder %s106, %s107
    %p118 = scmp.eq.s32.totalorder %s14, 0
    %p119 = por %p117, %p118
    %p120 = scmp.ne.s32.totalorder %s106, %s107
    %p121 = scmp.eq.s32.totalorder %s15, 1
    %p122 = por %p120, %p121
    %p124 = scmp.ne.s32.totalorder %s107, %s123
    %p125 = scmp.eq.s32.totalorder %s15, 0
    %p126 = por %p124, %p125
    %p127 = scmp.le.s32.totalorder 1, %s9
    %p128 = scmp.lt.s32.totalorder %s9, 3
    %p129 = pnand %p127, %p128
    %p130 = pneg %p129
    // Predicated region
    $region9: #{spectral_transform.3} parent=5 // pred_check
      _
    $region10: #{spectral_transform.3} parent=5 // pred_check_branch
      %132 = sbr.rel (%p129) target = $region12
    $region11: #{spectral_transform.3} parent=5 // pred_region
      %s133 = ssub.s32 %s9, 1
      // Predicated region
      $region13: #{spectral_transform.3} parent=11 // pred_check
        %p134 = pneg %p70
      $region14: #{spectral_transform.3} parent=11 // pred_check_branch
        %136 = sbr.rel (%p134) target = $region16
      $region15: #{spectral_transform.3} parent=11 // pred_region
        _
      $region16: #{spectral_transform.3} parent=11 // pred_fallthru
        _
      // Predicated region
      $region17: #{spectral_transform.3} parent=11 // pred_check
        %p137 = pneg %p91
      $region18: #{spectral_transform.3} parent=11 // pred_check_branch
        %139 = sbr.rel (%p137) target = $region20
      $region19: #{spectral_transform.3} parent=11 // pred_region
        _
      $region20: #{spectral_transform.3} parent=11 // pred_fallthru
        _
    $region12: #{spectral_transform.3} parent=5 // pred_fallthru
      _
    %p140 = scmp.lt.s32.totalorder %s9, 2
    // Predicated region
    $region21: #{spectral_transform.3} parent=5 // pred_check
      %p141 = pneg %p140
    $region22: #{spectral_transform.3} parent=5 // pred_check_branch
      %143 = sbr.rel (%p141) target = $region24
    $region23: #{spectral_transform.3} parent=5 // pred_region
      // Predicated region
      $region25: #{spectral_transform.3} parent=23 // pred_check
        %p144 = pneg %p43
      $region26: #{spectral_transform.3} parent=23 // pred_check_branch
        %146 = sbr.rel (%p144) target = $region28
      $region27: #{spectral_transform.3} parent=23 // pred_region
        %s147 = smul.u32 2, %s17
        %p148 = scmp.lt.s32.totalorder %s16, 1
        %s149 = scalar_select %p148, %s16, 1
        %p150 = scmp.lt.s32.totalorder %s147, 1
        %s151 = scalar_select %p150, %s147, 1
        %s152 = smul.addr %s149, 2
        %s153 = sadd.s32 %s151, %s152
        %s154 = smul.addr %s153, 4
        %s155 = scalar_lea.vmem %s0, %s154
        %s156 = smul.u32 2, %s17
      $region28: #{spectral_transform.3} parent=23 // pred_fallthru
        _
    $region24: #{spectral_transform.3} parent=5 // pred_fallthru
      _
    %p157 = scmp.le.s32.totalorder 1, %s9
    %p158 = scmp.lt.s32.totalorder %s9, 3
    %p159 = pnand %p157, %p158
    %p160 = pneg %p159
    // Predicated region
    $region29: #{spectral_transform.3} parent=5 // pred_check
      _
    $region30: #{spectral_transform.3} parent=5 // pred_check_branch
      %162 = sbr.rel (%p159) target = $region32
    $region31: #{spectral_transform.3} parent=5 // pred_region
      %s163 = ssub.s32 %s9, 1
      %s164 = smul.u32 2, %s19
      %p165 = scmp.lt.s32.totalorder %s18, 1
      %s166 = scalar_select %p165, %s18, 1
      %p167 = scmp.lt.s32.totalorder %s164, 1
      %s168 = scalar_select %p167, %s164, 1
      %s169 = smul.addr %s166, 2
      %s170 = sadd.s32 %s168, %s169
      %s171 = smul.addr %s170, 4
      %s172 = scalar_lea.vmem %s0, %s171
      %p173 = pneg %p49
      %p174 = pneg %p46
      %p175 = pneg %p70
      %p176 = pneg %p67
      %p177 = pneg %p91
      %p178 = pneg %p88
      %p179 = pneg %p119
      %p180 = pneg %p116
      %s181 = smul.u32 2, %s19
      %p182 = scmp.lt.s32.totalorder %s18, 1
      %s183 = scalar_select %p182, %s18, 1
      %p184 = scmp.lt.s32.totalorder %s181, 1
      %s185 = scalar_select %p184, %s181, 1
      %s186 = smul.addr %s183, 2
      %s187 = sadd.s32 %s185, %s186
      %s188 = smul.addr %s187, 2
      %s189 = scalar_lea.vmem %s3, %s188
      %s190 = smul.u32 2, %s19
      %p191 = scmp.lt.s32.totalorder %s18, 1
      %s192 = scalar_select %p191, %s18, 1
      %p193 = scmp.lt.s32.totalorder %s190, 1
      %s194 = scalar_select %p193, %s190, 1
      %s195 = smul.addr %s192, 2
      %s196 = sadd.s32 %s194, %s195
      %s197 = smul.addr %s196, 4
      %s198 = scalar_lea.vmem %s0, %s197
      %s199 = smul.u32 2, %s19
      %s200 = smul.u32 2, %s19
      %p201 = scmp.lt.s32.totalorder %s18, 1
      %s202 = scalar_select %p201, %s18, 1
      %p203 = scmp.lt.s32.totalorder %s200, 1
      %s204 = scalar_select %p203, %s200, 1
      %s205 = smul.addr %s202, 2
      %s206 = sadd.s32 %s204, %s205
      %s207 = smul.addr %s206, 2
      %s208 = scalar_lea.vmem %s3, %s207
      %s209 = smul.u32 2, %s19
      %v210 = vld [vmem:[%s1] sm:$0x3]
      %v211 = vld [vmem:[%s198] sm:$0xff]
      %v212 = vld [vmem:[%s2] sm:$0x3]
      %214 = vset.pattern.permute.xlu0 0
      %215 = vperm.xlu0 %214, %v212
      %v216 = vpop.permute.xlu0 %215
      %219 = vst [vmem:[#allocation1] ss:$2 sm:$0xff] %v211
      %v220 = vld.sshfl [vmem:[#allocation1] sm:$0xff pattern:$0x75316420]
      %v221 = vld.sshfl [vmem:[#allocation1 + $0x8] sm:$0xff pattern:$0x75316420]
      %vm222 = vcmask 31744
      %v224 = vsel %vm222, %v210, 0
      %vm226 = vcmask 1043456
      %v227 = vsel %vm226, %v220, 0
      %v229 = vsel %vm226, %v221, 0
      %231 = vmatpush.msra.mxu0 0.0
      %232 = vmatpush.msra.mxu0 0.0
      %233 = vmatpush.msra.mxu0 0.0
      %234 = vmatpush.msra.mxu0 0.0
      %235 = vmatpush.msra.mxu0 0.0
      %236 = vmatpush.msra.mxu0 0.0
      %237 = vmatpush.msra.mxu0 0.0
      %238 = vmatpush.msra.mxu0 0.0
      %239 = vmatpush.msra.mxu0 0.0
      %240 = vmatpush.msra.mxu0 0.0
      %241 = vmatpush.msra.mxu0 0.0
      %242 = vmatpush.msra.mxu0 0.0
      %243 = vmatpush.msra.mxu0 0.0
      %244 = vmatpush.msra.mxu0 0.0
      %245 = vmatpush.msra.mxu0 0.0
      %246 = vmatpush.msra.mxu0 %v227
      %247 = vmatmul.f32.gmra.mxu0 %v224
      %v248 = vpop.f32.mrf.mxu0
      %v249 = vadd.f32 %v216, %v248
      %250 = vdwg.mxu0
      %251 = vmatpush.msra.mxu0 0.0
      %252 = vmatpush.msra.mxu0 0.0
      %253 = vmatpush.msra.mxu0 0.0
      %254 = vmatpush.msra.mxu0 0.0
      %255 = vmatpush.msra.mxu0 0.0
      %256 = vmatpush.msra.mxu0 0.0
      %257 = vmatpush.msra.mxu0 0.0
      %258 = vmatpush.msra.mxu0 0.0
      %259 = vmatpush.msra.mxu0 0.0
      %260 = vmatpush.msra.mxu0 0.0
      %261 = vmatpush.msra.mxu0 0.0
      %262 = vmatpush.msra.mxu0 0.0
      %263 = vmatpush.msra.mxu0 0.0
      %264 = vmatpush.msra.mxu0 0.0
      %265 = vmatpush.msra.mxu0 0.0
      %266 = vmatpush.msra.mxu0 %v229
      %267 = vmatmul.f32.gmra.mxu0 %v224
      %v268 = vpop.f32.mrf.mxu0
      %v269 = vadd.f32 %v216, %v268
      %270 = vdwg.mxu0
      %vm271 = vcmp.ge.f32.partialorder %v249, 0.0
      %vm272 = vcmp.ge.f32.partialorder %v269, 0.0
      %v273 = vmul.f32 %v249, 0.2
      %v274 = vmul.f32 %v269, 0.2
      %v275 = vsel %vm271, %v249, %v273
      %v276 = vsel %vm272, %v269, %v274
      %v279 = vrot.slane %v276, 6
      %vm280 = vcmask 1041408
      %v281 = vsel %vm280, %v275, %v279
      %283 = vst [vmem:[%s208] sm:$0xf] %v281
      %s284 = smul.u32 2, %s19
      %p285 = scmp.lt.s32.totalorder %s18, 1
      %s286 = scalar_select %p285, %s18, 1
      %p287 = scmp.lt.s32.totalorder %s284, 1
      %s288 = scalar_select %p287, %s284, 1
      %s289 = smul.addr %s286, 2
      %s290 = sadd.s32 %s288, %s289
      %s291 = smul.addr %s290, 2
      %s292 = scalar_lea.vmem %s3, %s291
      // Predicated region
      $region33: #{spectral_transform.3} parent=31 // pred_check
        %p293 = pneg %p116
      $region34: #{spectral_transform.3} parent=31 // pred_check_branch
        %295 = sbr.rel (%p293) target = $region36
      $region35: #{spectral_transform.3} parent=31 // pred_region
        %s296 = smul.u32 2, %s19
      $region36: #{spectral_transform.3} parent=31 // pred_fallthru
        _
    $region32: #{spectral_transform.3} parent=5 // pred_fallthru
      _
    %p297 = scmp.le.s32.totalorder 2, %s9
    // Predicated region
    $region37: #{spectral_transform.3} parent=5 // pred_check
      %p298 = pneg %p297
    $region38: #{spectral_transform.3} parent=5 // pred_check_branch
      %300 = sbr.rel (%p298) target = $region40
    $region39: #{spectral_transform.3} parent=5 // pred_region
      %s301 = ssub.s32 %s9, 2
      // Predicated region
      $region41: #{spectral_transform.3} parent=39 // pred_check
        %p302 = pneg %p122
      $region42: #{spectral_transform.3} parent=39 // pred_check_branch
        %304 = sbr.rel (%p302) target = $region44
      $region43: #{spectral_transform.3} parent=39 // pred_region
        %s305 = smul.u32 2, %s21
        %p306 = scmp.lt.s32.totalorder %s20, 1
        %s307 = scalar_select %p306, %s20, 1
        %p308 = scmp.lt.s32.totalorder %s305, 1
        %s309 = scalar_select %p308, %s305, 1
        %s310 = smul.addr %s307, 2
        %s311 = sadd.s32 %s309, %s310
        %s312 = smul.addr %s311, 2
        %s313 = scalar_lea.vmem %s3, %s312
      $region44: #{spectral_transform.3} parent=39 // pred_fallthru
        _
    $region40: #{spectral_transform.3} parent=5 // pred_fallthru
      _
  $region6: #{spectral_transform.3} parent=0 // loop_footer
    %s13 = sadd.s32 1, %s9
  $region7: #{spectral_transform.3} parent=0 // loop_footer_branch
    %8 = sbr.rel target = $region3
  $region8: #{spectral_transform.3} parent=0 // loop_exit
    _

// kernel: reverse.0
$region0: #{reverse.0}
  %s0 = inlined_call_operand.vmem [shape: f32[2,2,16,7], index: 0, kind: input, shape index: {}]
  %s1 = inlined_call_operand.vmem [shape: f32[2,2,16,7], index: 1, kind: output, shape index: {}]
  $region1: #{reverse.0} parent=0
    #allocation0 [shape = 'u8[32768]{0}', space=vmem, size = 0x8000, scoped, tag = 'operand span for operand 0']
    #allocation1 [shape = 'u8[16384]{0}', space=vmem, size = 0x4000, scoped, tag = 'operand span for operand 1']
    %s2 = scalar_lea.vmem [#allocation0], 8
    // Predicated region
    $region2: #{reverse.0} parent=1 // pred_check
      _
    $region3: #{reverse.0} parent=1 // pred_check_branch
      %4 = sbr.rel (0) target = $region5
    $region4: #{reverse.0} parent=1 // pred_region
      // Predicated region
      $region6: #{reverse.0} parent=4 // pred_check
        _
      $region7: #{reverse.0} parent=4 // pred_check_branch
        %6 = sbr.rel (0) target = $region9
      $region8: #{reverse.0} parent=4 // pred_region
        // Predicated region
        $region21: #{reverse.0} parent=8 // pred_check
          _
        $region22: #{reverse.0} parent=8 // pred_check_branch
          %28 = sbr.rel (0) target = $region24
        $region23: #{reverse.0} parent=8 // pred_region
          loop: start=0, step=1, limit=1
          $region25: #{reverse.0} parent=23 // loop_pre_header
            _
          $region26: #{reverse.0} parent=23 // loop_header
            %s30 = sphi 0, %s34
            %p31 = scmp.ge.s32.totalorder %s30, 1
            %s35 = sphi %s0, %s0
            %s36 = sphi %s2, %s2
          $region27: #{reverse.0} parent=23 // loop_header_branch
            %33 = sbr.rel (%p31) target = $region31
          $region28: #{reverse.0} parent=23 // loop_body
            %v37 = vld [vmem:[%s35] sm:$0xff]
            %38 = vst [vmem:[%s36] sm:$0xff] %v37
            %v39 = vld [vmem:[%s35 + $0x8] sm:$0xff]
            %40 = vst [vmem:[%s36 + $0x10] sm:$0xff] %v39
            %v41 = vld [vmem:[%s35 + $0x10] sm:$0xff]
            %42 = vst [vmem:[%s36 + $0x20] sm:$0xff] %v41
            %v43 = vld [vmem:[%s35 + $0x18] sm:$0xff]
            %44 = vst [vmem:[%s36 + $0x30] sm:$0xff] %v43
          $region29: #{reverse.0} parent=23 // loop_footer
            %s34 = sadd.s32 1, %s30
          $region30: #{reverse.0} parent=23 // loop_footer_branch
            %29 = sbr.rel target = $region26
          $region31: #{reverse.0} parent=23 // loop_exit
            _
        $region24: #{reverse.0} parent=8 // pred_fallthru
          _
        // Predicated region
        $region32: #{reverse.0} parent=8 // pred_check
          _
        $region33: #{reverse.0} parent=8 // pred_check_branch
          %46 = sbr.rel target = $region35
        $region34: #{reverse.0} parent=8 // pred_region
          _
        $region35: #{reverse.0} parent=8 // pred_fallthru
          _
      $region9: #{reverse.0} parent=4 // pred_fallthru
        _
      // Predicated region
      $region10: #{reverse.0} parent=4 // pred_check
        _
      $region11: #{reverse.0} parent=4 // pred_check_branch
        %8 = sbr.rel target = $region13
      $region12: #{reverse.0} parent=4 // pred_region
        %s10 = ssub.s32 256, 1
        loop: start=0, step=1, limit=1
        $region14: #{reverse.0} parent=12 // loop_pre_header
          _
        $region15: #{reverse.0} parent=12 // loop_header
          %s12 = sphi 0, %s16
          %p13 = scmp.ge.s32.totalorder %s12, 1
          %s17 = sphi %s0, %s0
          %s18 = sphi %s2, %s2
        $region16: #{reverse.0} parent=12 // loop_header_branch
          %15 = sbr.rel (%p13) target = $region20
        $region17: #{reverse.0} parent=12 // loop_body
          %v19 = vld [vmem:[%s17] sm:%s10]
          %20 = vst [vmem:[%s18] sm:%s10] %v19
          %v21 = vld [vmem:[%s17 + $0x8] sm:%s10]
          %22 = vst [vmem:[%s18 + $0x10] sm:%s10] %v21
          %v23 = vld [vmem:[%s17 + $0x10] sm:%s10]
          %24 = vst [vmem:[%s18 + $0x20] sm:%s10] %v23
          %v25 = vld [vmem:[%s17 + $0x18] sm:%s10]
          %26 = vst [vmem:[%s18 + $0x30] sm:%s10] %v25
        $region18: #{reverse.0} parent=12 // loop_footer
          %s16 = sadd.s32 1, %s12
        $region19: #{reverse.0} parent=12 // loop_footer_branch
          %11 = sbr.rel target = $region15
        $region20: #{reverse.0} parent=12 // loop_exit
          _
      $region13: #{reverse.0} parent=4 // pred_fallthru
        _
    $region5: #{reverse.0} parent=1 // pred_fallthru
      _
    %47 = vnop
    %s48 = scalar_lea.vmem [#allocation0], 7
    %v49 = vld [vmem:[%s48] ss:$-1 sm:$0xff]
    %v50 = vrot.slane %v49, 1
    %51 = vst [vmem:[#allocation1] sm:$0xff] %v50
    %s52 = scalar_lea.vmem [#allocation0], 8
    %s53 = scalar_lea.vmem %s52, 7 [#allocation0]
    %v54 = vld [vmem:[%s53] ss:$-1 sm:$0xff]
    %v55 = vrot.slane %v54, 1
    %v56 = vlaneseq
    %v57 = vshrl.u32 %v56, 7
    %vm58 = vcmp.lt.s32.totalorder %v57, 7
    %59 = vst.msk [vmem:[#allocation1] sm:$0xff] %vm58, %v55
    %s60 = scalar_lea.vmem [#allocation1], 8
    %s61 = scalar_lea.vmem [#allocation0], 16
    %s62 = scalar_lea.vmem %s61, 7 [#allocation0]
    %v63 = vld [vmem:[%s62] ss:$-1 sm:$0xff]
    %v64 = vrot.slane %v63, 1
    %65 = vst [vmem:[%s60] sm:$0xff] %v64
    %s66 = scalar_lea.vmem %s61, 8 [#allocation0]
    %s67 = scalar_lea.vmem %s66, 7 [#allocation0]
    %v68 = vld [vmem:[%s67] ss:$-1 sm:$0xff]
    %v69 = vrot.slane %v68, 1
    %v70 = vlaneseq
    %v71 = vshrl.u32 %v70, 7
    %vm72 = vcmp.lt.s32.totalorder %v71, 7
    %73 = vst.msk [vmem:[%s60] sm:$0xff] %vm72, %v69
    %s74 = scalar_lea.vmem [#allocation1], 16
    %s75 = scalar_lea.vmem [#allocation0], 32
    %s76 = scalar_lea.vmem %s75, 7 [#allocation0]
    %v77 = vld [vmem:[%s76] ss:$-1 sm:$0xff]
    %v78 = vrot.slane %v77, 1
    %79 = vst [vmem:[%s74] sm:$0xff] %v78
    %s80 = scalar_lea.vmem %s75, 8 [#allocation0]
    %s81 = scalar_lea.vmem %s80, 7 [#allocation0]
    %v82 = vld [vmem:[%s81] ss:$-1 sm:$0xff]
    %v83 = vrot.slane %v82, 1
    %v84 = vlaneseq
    %v85 = vshrl.u32 %v84, 7
    %vm86 = vcmp.lt.s32.totalorder %v85, 7
    %87 = vst.msk [vmem:[%s74] sm:$0xff] %vm86, %v83
    %s88 = scalar_lea.vmem [#allocation1], 24
    %s89 = scalar_lea.vmem [#allocation0], 48
    %s90 = scalar_lea.vmem %s89, 7 [#allocation0]
    %v91 = vld [vmem:[%s90] ss:$-1 sm:$0xff]
    %v92 = vrot.slane %v91, 1
    %93 = vst [vmem:[%s88] sm:$0xff] %v92
    %s94 = scalar_lea.vmem %s89, 8 [#allocation0]
    %s95 = scalar_lea.vmem %s94, 7 [#allocation0]
    %v96 = vld [vmem:[%s95] ss:$-1 sm:$0xff]
    %v97 = vrot.slane %v96, 1
    %v98 = vlaneseq
    %v99 = vshrl.u32 %v98, 7
    %vm100 = vcmp.lt.s32.totalorder %v99, 7
    %101 = vst.msk [vmem:[%s88] sm:$0xff] %vm100, %v97
    // Predicated region
    $region36: #{reverse.0} parent=1 // pred_check
      _
    $region37: #{reverse.0} parent=1 // pred_check_branch
      %103 = sbr.rel (0) target = $region39
    $region38: #{reverse.0} parent=1 // pred_region
      // Predicated region
      $region40: #{reverse.0} parent=38 // pred_check
        _
      $region41: #{reverse.0} parent=38 // pred_check_branch
        %105 = sbr.rel (0) target = $region43
      $region42: #{reverse.0} parent=38 // pred_region
        // Predicated region
        $region55: #{reverse.0} parent=42 // pred_check
          _
        $region56: #{reverse.0} parent=42 // pred_check_branch
          %127 = sbr.rel (0) target = $region58
        $region57: #{reverse.0} parent=42 // pred_region
          loop: start=0, step=1, limit=1
          $region59: #{reverse.0} parent=57 // loop_pre_header
            _
          $region60: #{reverse.0} parent=57 // loop_header
            %s129 = sphi 0, %s133
            %p130 = scmp.ge.s32.totalorder %s129, 1
            %s134 = sphi [#allocation1], [#allocation1]
            %s135 = sphi %s1, %s1
          $region61: #{reverse.0} parent=57 // loop_header_branch
            %132 = sbr.rel (%p130) target = $region65
          $region62: #{reverse.0} parent=57 // loop_body
            %v136 = vld [vmem:[%s134] sm:$0xff]
            %137 = vst [vmem:[%s135] sm:$0xff] %v136
            %v138 = vld [vmem:[%s134 + $0x8] sm:$0xff]
            %139 = vst [vmem:[%s135 + $0x8] sm:$0xff] %v138
            %v140 = vld [vmem:[%s134 + $0x10] sm:$0xff]
            %141 = vst [vmem:[%s135 + $0x10] sm:$0xff] %v140
            %v142 = vld [vmem:[%s134 + $0x18] sm:$0xff]
            %143 = vst [vmem:[%s135 + $0x18] sm:$0xff] %v142
          $region63: #{reverse.0} parent=57 // loop_footer
            %s133 = sadd.s32 1, %s129
          $region64: #{reverse.0} parent=57 // loop_footer_branch
            %128 = sbr.rel target = $region60
          $region65: #{reverse.0} parent=57 // loop_exit
            _
        $region58: #{reverse.0} parent=42 // pred_fallthru
          _
        // Predicated region
        $region66: #{reverse.0} parent=42 // pred_check
          _
        $region67: #{reverse.0} parent=42 // pred_check_branch
          %145 = sbr.rel target = $region69
        $region68: #{reverse.0} parent=42 // pred_region
          _
        $region69: #{reverse.0} parent=42 // pred_fallthru
          _
      $region43: #{reverse.0} parent=38 // pred_fallthru
        _
      // Predicated region
      $region44: #{reverse.0} parent=38 // pred_check
        _
      $region45: #{reverse.0} parent=38 // pred_check_branch
        %107 = sbr.rel target = $region47
      $region46: #{reverse.0} parent=38 // pred_region
        %s109 = ssub.s32 256, 1
        loop: start=0, step=1, limit=1
        $region48: #{reverse.0} parent=46 // loop_pre_header
          _
        $region49: #{reverse.0} parent=46 // loop_header
          %s111 = sphi 0, %s115
          %p112 = scmp.ge.s32.totalorder %s111, 1
          %s116 = sphi [#allocation1], [#allocation1]
          %s117 = sphi %s1, %s1
        $region50: #{reverse.0} parent=46 // loop_header_branch
          %114 = sbr.rel (%p112) target = $region54
        $region51: #{reverse.0} parent=46 // loop_body
          %v118 = vld [vmem:[%s116] sm:%s109]
          %119 = vst [vmem:[%s117] sm:%s109] %v118
          %v120 = vld [vmem:[%s116 + $0x8] sm:%s109]
          %121 = vst [vmem:[%s117 + $0x8] sm:%s109] %v120
          %v122 = vld [vmem:[%s116 + $0x10] sm:%s109]
          %123 = vst [vmem:[%s117 + $0x10] sm:%s109] %v122
          %v124 = vld [vmem:[%s116 + $0x18] sm:%s109]
          %125 = vst [vmem:[%s117 + $0x18] sm:%s109] %v124
        $region52: #{reverse.0} parent=46 // loop_footer
          %s115 = sadd.s32 1, %s111
        $region53: #{reverse.0} parent=46 // loop_footer_branch
          %110 = sbr.rel target = $region49
        $region54: #{reverse.0} parent=46 // loop_exit
          _
      $region47: #{reverse.0} parent=38 // pred_fallthru
        _
    $region39: #{reverse.0} parent=1 // pred_fallthru
      _
    %146 = vnop

// kernel: spectral_transform.4
$region0: #{spectral_transform.4}
  #allocation0 [shape = 'u32[]', space=smem, size = 0x4, offset = 0x4, fixed_abs, tag = 'smem constant byte address 0x4 - core index']
  #allocation1 [shape = 'u32[72,128]{1,0:T(1,128)}', space=vmem, size = 0x9000, scoped, tag = 'internal scratch']
  %s0 = inlined_call_operand.vmem [shape: f32[2,2,144], index: 0, kind: input, shape index: {}]
  %s1 = inlined_call_operand.vmem [shape: f32[2,2,144], index: 1, kind: input, shape index: {}]
  %s2 = inlined_call_operand.vmem [shape: f32[4,2], index: 2, kind: input, shape index: {}]
  %s3 = inlined_call_operand.vmem [shape: f32[4,2], index: 3, kind: input, shape index: {}]
  %s4 = inlined_call_operand.vmem [shape: f32[4,1], index: 4, kind: input, shape index: {}]
  %s5 = inlined_call_operand.vmem [shape: f32[2,4,144], index: 5, kind: output, shape index: {}]
  %s6 = sld [smem:[#allocation0]]
  $region53: #{spectral_transform.4} parent=0
    _
  %s8 = ssub.s32 1, %s6
  %s9 = scalar_select 0, %s8, %s6
  loop: start=0, step=1, limit=4
  $region2: #{spectral_transform.4} parent=0 // loop_pre_header
    _
  $region3: #{spectral_transform.4} parent=0 // loop_header
    %s11 = sphi 0, %s15
    %p12 = scmp.ge.s32.totalorder %s11, 4
    %s18 = sphi 0, %s30
    %s19 = sphi 0, %s26
    %s20 = sphi 0, %s18
    %s21 = sphi 0, %s19
    %s22 = sphi 0, %s20
    %s23 = sphi 0, %s21
    %s35 = sphi 0, %s37
    %s38 = sphi 0, %s35
    %s39 = sphi 0, %s38
    %s55 = sphi 0, %s39
    %s63 = sphi 0, %s65
    %s66 = sphi 0, %s63
    %s67 = sphi 0, %s66
    %s83 = sphi 0, %s67
    %s87 = sphi 0, %s87
    %s89 = sphi 0, %s87
    %s90 = sphi 0, %s89
    %s104 = sphi 0, %s90
    %s108 = sphi 0, %s108
    %s110 = sphi 0, %s108
    %s111 = sphi 0, %s110
    %s125 = sphi 0, %s111
    %s129 = sphi 0, %s129
    %s131 = sphi 0, %s129
    %s132 = sphi 0, %s131
    %s146 = sphi 0, %s132
    %s154 = sphi 0, %s156
    %s157 = sphi 0, %s154
    %s158 = sphi 0, %s157
    %s174 = sphi 0, %s158
  $region4: #{spectral_transform.4} parent=0 // loop_header_branch
    %14 = sbr.rel (%p12) target = $region8
  $region5: #{spectral_transform.4} parent=0 // loop_body
    %s16 = ssub.s32 %s11, 1
    %s17 = ssub.s32 %s11, 2
    %s24 = sadd.s32 1, %s19
    %p25 = scmp.ge.s32.totalorder %s24, 1
    %s26 = scalar_select %p25, 0, %s24
    %s27 = sadd.s32 1, %s18
    %s28 = scalar_select %p25, %s27, %s18
    %p29 = scmp.ge.s32.totalorder %s28, 2
    %s30 = scalar_select %p29, 0, %s28
    %s31 = ssub.s32 %s18, %s30
    %s32 = ssub.s32 %s19, %s26
    %s33 = sor.u32 %s31, %s32
    %p34 = scmp.eq.s32.totalorder %s33, 0
    %s36 = sadd.s32 %s35, 1
    %s37 = scalar_select %p34, %s35, %s36
    %p40 = pneg %p34
    %p41 = scmp.eq.s32.totalorder %s11, 1
    %p42 = por %p40, %p41
    %p43 = scmp.ne.s32.totalorder %s35, %s38
    %p44 = scmp.eq.s32.totalorder %s11, 0
    %p45 = por %p43, %p44
    %p46 = scmp.ne.s32.totalorder %s35, %s38
    %p47 = scmp.eq.s32.totalorder %s16, 1
    %p48 = por %p46, %p47
    %p49 = scmp.ne.s32.totalorder %s38, %s39
    %p50 = scmp.eq.s32.totalorder %s16, 0
    %p51 = por %p49, %p50
    %p52 = scmp.ne.s32.totalorder %s38, %s39
    %p53 = scmp.eq.s32.totalorder %s17, 1
    %p54 = por %p52, %p53
    %p56 = scmp.ne.s32.totalorder %s39, %s55
    %p57 = scmp.eq.s32.totalorder %s17, 0
    %p58 = por %p56, %p57
    %s59 = ssub.s32 %s18, %s30
    %s60 = ssub.s32 %s19, %s26
    %s61 = sor.u32 %s59, %s60
    %p62 = scmp.eq.s32.totalorder %s61, 0
    %s64 = sadd.s32 %s63, 1
    %s65 = scalar_select %p62, %s63, %s64
    %p68 = pneg %p62
    %p69 = scmp.eq.s32.totalorder %s11, 1
    %p70 = por %p68, %p69
    %p71 = scmp.ne.s32.totalorder %s63, %s66
    %p72 = scmp.eq.s32.totalorder %s11, 0
    %p73 = por %p71, %p72
    %p74 = scmp.ne.s32.totalorder %s63, %s66
    %p75 = scmp.eq.s32.totalorder %s16, 1
    %p76 = por %p74, %p75
    %p77 = scmp.ne.s32.totalorder %s66, %s67
    %p78 = scmp.eq.s32.totalorder %s16, 0
    %p79 = por %p77, %p78
    %p80 = scmp.ne.s32.totalorder %s66, %s67
    %p81 = scmp.eq.s32.totalorder %s17, 1
    %p82 = por %p80, %p81
    %p84 = scmp.ne.s32.totalorder %s67, %s83
    %p85 = scmp.eq.s32.totalorder %s17, 0
    %p86 = por %p84, %p85
    %s88 = sadd.s32 %s87, 1
    %p91 = scmp.eq.s32.totalorder %s11, 1
    %p92 = scmp.ne.s32.totalorder %s87, %s89
    %p93 = scmp.eq.s32.totalorder %s11, 0
    %p94 = por %p92, %p93
    %p95 = scmp.ne.s32.totalorder %s87, %s89
    %p96 = scmp.eq.s32.totalorder %s16, 1
    %p97 = por %p95, %p96
    %p98 = scmp.ne.s32.totalorder %s89, %s90
    %p99 = scmp.eq.s32.totalorder %s16, 0
    %p100 = por %p98, %p99
    %p101 = scmp.ne.s32.totalorder %s89, %s90
    %p102 = scmp.eq.s32.totalorder %s17, 1
    %p103 = por %p101, %p102
    %p105 = scmp.ne.s32.totalorder %s90, %s104
    %p106 = scmp.eq.s32.totalorder %s17, 0
    %p107 = por %p105, %p106
    %s109 = sadd.s32 %s108, 1
    %p112 = scmp.eq.s32.totalorder %s11, 1
    %p113 = scmp.ne.s32.totalorder %s108, %s110
    %p114 = scmp.eq.s32.totalorder %s11, 0
    %p115 = por %p113, %p114
    %p116 = scmp.ne.s32.totalorder %s108, %s110
    %p117 = scmp.eq.s32.totalorder %s16, 1
    %p118 = por %p116, %p117
    %p119 = scmp.ne.s32.totalorder %s110, %s111
    %p120 = scmp.eq.s32.totalorder %s16, 0
    %p121 = por %p119, %p120
    %p122 = scmp.ne.s32.totalorder %s110, %s111
    %p123 = scmp.eq.s32.totalorder %s17, 1
    %p124 = por %p122, %p123
    %p126 = scmp.ne.s32.totalorder %s111, %s125
    %p127 = scmp.eq.s32.totalorder %s17, 0
    %p128 = por %p126, %p127
    %s130 = sadd.s32 %s129, 1
    %p133 = scmp.eq.s32.totalorder %s11, 1
    %p134 = scmp.ne.s32.totalorder %s129, %s131
    %p135 = scmp.eq.s32.totalorder %s11, 0
    %p136 = por %p134, %p135
    %p137 = scmp.ne.s32.totalorder %s129, %s131
    %p138 = scmp.eq.s32.totalorder %s16, 1
    %p139 = por %p137, %p138
    %p140 = scmp.ne.s32.totalorder %s131, %s132
    %p141 = scmp.eq.s32.totalorder %s16, 0
    %p142 = por %p140, %p141
    %p143 = scmp.ne.s32.totalorder %s131, %s132
    %p144 = scmp.eq.s32.totalorder %s17, 1
    %p145 = por %p143, %p144
    %p147 = scmp.ne.s32.totalorder %s132, %s146
    %p148 = scmp.eq.s32.totalorder %s17, 0
    %p149 = por %p147, %p148
    %s150 = ssub.s32 %s18, %s30
    %s151 = ssub.s32 %s19, %s26
    %s152 = sor.u32 %s150, %s151
    %p153 = scmp.eq.s32.totalorder %s152, 0
    %s155 = sadd.s32 %s154, 1
    %s156 = scalar_select %p153, %s154, %s155
    %p159 = pneg %p153
    %p160 = scmp.eq.s32.totalorder %s11, 1
    %p161 = por %p159, %p160
    %p162 = scmp.ne.s32.totalorder %s154, %s157
    %p163 = scmp.eq.s32.totalorder %s11, 0
    %p164 = por %p162, %p163
    %p165 = scmp.ne.s32.totalorder %s154, %s157
    %p166 = scmp.eq.s32.totalorder %s16, 1
    %p167 = por %p165, %p166
    %p168 = scmp.ne.s32.totalorder %s157, %s158
    %p169 = scmp.eq.s32.totalorder %s16, 0
    %p170 = por %p168, %p169
    %p171 = scmp.ne.s32.totalorder %s157, %s158
    %p172 = scmp.eq.s32.totalorder %s17, 1
    %p173 = por %p171, %p172
    %p175 = scmp.ne.s32.totalorder %s158, %s174
    %p176 = scmp.eq.s32.totalorder %s17, 0
    %p177 = por %p175, %p176
    %p178 = scmp.le.s32.totalorder 1, %s11
    %p179 = scmp.lt.s32.totalorder %s11, 3
    %p180 = pnand %p178, %p179
    %p181 = pneg %p180
    // Predicated region
    $region9: #{spectral_transform.4} parent=5 // pred_check
      _
    $region10: #{spectral_transform.4} parent=5 // pred_check_branch
      %183 = sbr.rel (%p180) target = $region12
    $region11: #{spectral_transform.4} parent=5 // pred_region
      %s184 = ssub.s32 %s11, 1
      // Predicated region
      $region13: #{spectral_transform.4} parent=11 // pred_check
        %p185 = pneg %p100
      $region14: #{spectral_transform.4} parent=11 // pred_check_branch
        %187 = sbr.rel (%p185) target = $region16
      $region15: #{spectral_transform.4} parent=11 // pred_region
        _
      $region16: #{spectral_transform.4} parent=11 // pred_fallthru
        _
      // Predicated region
      $region17: #{spectral_transform.4} parent=11 // pred_check
        %p188 = pneg %p121
      $region18: #{spectral_transform.4} parent=11 // pred_check_branch
        %190 = sbr.rel (%p188) target = $region20
      $region19: #{spectral_transform.4} parent=11 // pred_region
        _
      $region20: #{spectral_transform.4} parent=11 // pred_fallthru
        _
      // Predicated region
      $region21: #{spectral_transform.4} parent=11 // pred_check
        %p191 = pneg %p142
      $region22: #{spectral_transform.4} parent=11 // pred_check_branch
        %193 = sbr.rel (%p191) target = $region24
      $region23: #{spectral_transform.4} parent=11 // pred_region
        _
      $region24: #{spectral_transform.4} parent=11 // pred_fallthru
        _
    $region12: #{spectral_transform.4} parent=5 // pred_fallthru
      _
    %p194 = scmp.lt.s32.totalorder %s11, 2
    // Predicated region
    $region25: #{spectral_transform.4} parent=5 // pred_check
      %p195 = pneg %p194
    $region26: #{spectral_transform.4} parent=5 // pred_check_branch
      %197 = sbr.rel (%p195) target = $region28
    $region27: #{spectral_transform.4} parent=5 // pred_region
      // Predicated region
      $region29: #{spectral_transform.4} parent=27 // pred_check
        %p198 = pneg %p45
      $region30: #{spectral_transform.4} parent=27 // pred_check_branch
        %200 = sbr.rel (%p198) target = $region32
      $region31: #{spectral_transform.4} parent=27 // pred_region
        %s201 = smul.u32 2, %s19
        %p202 = scmp.lt.s32.totalorder %s18, 1
        %s203 = scalar_select %p202, %s18, 1
        %p204 = scmp.lt.s32.totalorder %s201, 1
        %s205 = scalar_select %p204, %s201, 1
        %s206 = smul.addr %s203, 2
        %s207 = sadd.s32 %s205, %s206
        %s208 = smul.addr %s207, 2
        %s209 = scalar_lea.vmem %s0, %s208
        %s210 = smul.u32 2, %s19
      $region32: #{spectral_transform.4} parent=27 // pred_fallthru
        _
      // Predicated region
      $region33: #{spectral_transform.4} parent=27 // pred_check
        %p211 = pneg %p73
      $region34: #{spectral_transform.4} parent=27 // pred_check_branch
        %213 = sbr.rel (%p211) target = $region36
      $region35: #{spectral_transform.4} parent=27 // pred_region
        %s214 = smul.u32 2, %s19
        %p215 = scmp.lt.s32.totalorder %s18, 1
        %s216 = scalar_select %p215, %s18, 1
        %p217 = scmp.lt.s32.totalorder %s214, 1
        %s218 = scalar_select %p217, %s214, 1
        %s219 = smul.addr %s216, 2
        %s220 = sadd.s32 %s218, %s219
        %s221 = smul.addr %s220, 2
        %s222 = scalar_lea.vmem %s1, %s221
        %s223 = smul.u32 2, %s19
      $region36: #{spectral_transform.4} parent=27 // pred_fallthru
        _
    $region28: #{spectral_transform.4} parent=5 // pred_fallthru
      _
    %p224 = scmp.le.s32.totalorder 1, %s11
    %p225 = scmp.lt.s32.totalorder %s11, 3
    %p226 = pnand %p224, %p225
    %p227 = pneg %p226
    // Predicated region
    $region37: #{spectral_transform.4} parent=5 // pred_check
      _
    $region38: #{spectral_transform.4} parent=5 // pred_check_branch
      %229 = sbr.rel (%p226) target = $region40
    $region39: #{spectral_transform.4} parent=5 // pred_region
      %s230 = ssub.s32 %s11, 1
      %s231 = smul.u32 2, %s21
      %p232 = scmp.lt.s32.totalorder %s20, 1
      %s233 = scalar_select %p232, %s20, 1
      %p234 = scmp.lt.s32.totalorder %s231, 1
      %s235 = scalar_select %p234, %s231, 1
      %s236 = smul.addr %s233, 2
      %s237 = sadd.s32 %s235, %s236
      %s238 = smul.addr %s237, 2
      %s239 = scalar_lea.vmem %s0, %s238
      %p240 = pneg %p51
      %p241 = pneg %p48
      %s242 = smul.u32 2, %s21
      %p243 = scmp.lt.s32.totalorder %s20, 1
      %s244 = scalar_select %p243, %s20, 1
      %p245 = scmp.lt.s32.totalorder %s242, 1
      %s246 = scalar_select %p245, %s242, 1
      %s247 = smul.addr %s244, 2
      %s248 = sadd.s32 %s246, %s247
      %s249 = smul.addr %s248, 2
      %s250 = scalar_lea.vmem %s1, %s249
      %p251 = pneg %p79
      %p252 = pneg %p76
      %p253 = pneg %p100
      %p254 = pneg %p97
      %p255 = pneg %p121
      %p256 = pneg %p118
      %p257 = pneg %p142
      %p258 = pneg %p139
      %p259 = pneg %p170
      %p260 = pneg %p167
      %s261 = smul.u32 2, %s21
      %p262 = scmp.lt.s32.totalorder %s20, 1
      %s263 = scalar_select %p262, %s20, 1
      %p264 = scmp.lt.s32.totalorder %s261, 1
      %s265 = scalar_select %p264, %s261, 1
      %s266 = smul.addr %s263, 2
      %s267 = sadd.s32 %s265, %s266
      %s268 = smul.addr %s267, 4
      %s269 = scalar_lea.vmem %s5, %s268
      %s270 = smul.u32 2, %s21
      %p271 = scmp.lt.s32.totalorder %s20, 1
      %s272 = scalar_select %p271, %s20, 1
      %p273 = scmp.lt.s32.totalorder %s270, 1
      %s274 = scalar_select %p273, %s270, 1
      %s275 = smul.addr %s272, 2
      %s276 = sadd.s32 %s274, %s275
      %s277 = smul.addr %s276, 2
      %s278 = scalar_lea.vmem %s0, %s277
      %s279 = smul.u32 2, %s21
      %s280 = smul.u32 2, %s21
      %p281 = scmp.lt.s32.totalorder %s20, 1
      %s282 = scalar_select %p281, %s20, 1
      %p283 = scmp.lt.s32.totalorder %s280, 1
      %s284 = scalar_select %p283, %s280, 1
      %s285 = smul.addr %s282, 2
      %s286 = sadd.s32 %s284, %s285
      %s287 = smul.addr %s286, 2
      %s288 = scalar_lea.vmem %s1, %s287
      %s289 = smul.u32 2, %s21
      %s290 = smul.u32 2, %s21
      %p291 = scmp.lt.s32.totalorder %s20, 1
      %s292 = scalar_select %p291, %s20, 1
      %p293 = scmp.lt.s32.totalorder %s290, 1
      %s294 = scalar_select %p293, %s290, 1
      %s295 = smul.addr %s292, 2
      %s296 = sadd.s32 %s294, %s295
      %s297 = smul.addr %s296, 4
      %s298 = scalar_lea.vmem %s5, %s297
      %s299 = smul.u32 2, %s21
      %v300 = vld [vmem:[%s2] sm:$0xf]
      %v301 = vld [vmem:[%s278] sm:$0xf]
      %v302 = vld [vmem:[%s3] sm:$0xf]
      %v303 = vld [vmem:[%s288] sm:$0xf]
      %305 = vst [vmem:[#allocation1] ss:$4 sm:$0xff] %v303
      %v306 = vld.sshfl [vmem:[#allocation1] sm:$0xff pattern:$0x73625140]
      %v307 = vld.sshfl [vmem:[#allocation1 + $0x8] sm:$0xff pattern:$0x73625140]
      %vm308 = vcmask 15360
      %v310 = vsel %vm308, %v302, 0
      %vm312 = vcmask 1041408
      %v313 = vsel %vm312, %v306, 0
      %v315 = vsel %vm312, %v307, 0
      %317 = vmatpush.msra.mxu0 0.0
      %318 = vmatpush.msra.mxu0 0.0
      %319 = vmatpush.msra.mxu0 0.0
      %320 = vmatpush.msra.mxu0 0.0
      %321 = vmatpush.msra.mxu0 0.0
      %322 = vmatpush.msra.mxu0 0.0
      %323 = vmatpush.msra.mxu0 0.0
      %324 = vmatpush.msra.mxu0 0.0
      %325 = vmatpush.msra.mxu0 0.0
      %326 = vmatpush.msra.mxu0 0.0
      %327 = vmatpush.msra.mxu0 0.0
      %328 = vmatpush.msra.mxu0 0.0
      %329 = vmatpush.msra.mxu0 0.0
      %330 = vmatpush.msra.mxu0 0.0
      %331 = vmatpush.msra.mxu0 0.0
      %332 = vmatpush.msra.mxu0 %v313
      %333 = vmatmul.f32.gmra.mxu0 %v310
      %v334 = vpop.f32.mrf.mxu0
      %v335 = vadd.f32 0.0, %v334
      %336 = vdwg.mxu0
      %337 = vmatpush.msra.mxu0 0.0
      %338 = vmatpush.msra.mxu0 0.0
      %339 = vmatpush.msra.mxu0 0.0
      %340 = vmatpush.msra.mxu0 0.0
      %341 = vmatpush.msra.mxu0 0.0
      %342 = vmatpush.msra.mxu0 0.0
      %343 = vmatpush.msra.mxu0 0.0
      %344 = vmatpush.msra.mxu0 0.0
      %345 = vmatpush.msra.mxu0 0.0
      %346 = vmatpush.msra.mxu0 0.0
      %347 = vmatpush.msra.mxu0 0.0
      %348 = vmatpush.msra.mxu0 0.0
      %349 = vmatpush.msra.mxu0 0.0
      %350 = vmatpush.msra.mxu0 0.0
      %351 = vmatpush.msra.mxu0 0.0
      %352 = vmatpush.msra.mxu0 %v315
      %353 = vmatmul.f32.gmra.mxu0 %v310
      %v354 = vpop.f32.mrf.mxu0
      %v355 = vadd.f32 0.0, %v354
      %356 = vdwg.mxu0
      %358 = vst [vmem:[#allocation1] ss:$4 sm:$0xff] %v301
      %v359 = vld.sshfl [vmem:[#allocation1] sm:$0xff pattern:$0x73625140]
      %v360 = vld.sshfl [vmem:[#allocation1 + $0x8] sm:$0xff pattern:$0x73625140]
      %v362 = vsel %vm308, %v300, 0
      %v364 = vsel %vm312, %v359, 0
      %v366 = vsel %vm312, %v360, 0
      %368 = vmatpush.msra.mxu0 0.0
      %369 = vmatpush.msra.mxu0 0.0
      %370 = vmatpush.msra.mxu0 0.0
      %371 = vmatpush.msra.mxu0 0.0
      %372 = vmatpush.msra.mxu0 0.0
      %373 = vmatpush.msra.mxu0 0.0
      %374 = vmatpush.msra.mxu0 0.0
      %375 = vmatpush.msra.mxu0 0.0
      %376 = vmatpush.msra.mxu0 0.0
      %377 = vmatpush.msra.mxu0 0.0
      %378 = vmatpush.msra.mxu0 0.0
      %379 = vmatpush.msra.mxu0 0.0
      %380 = vmatpush.msra.mxu0 0.0
      %381 = vmatpush.msra.mxu0 0.0
      %382 = vmatpush.msra.mxu0 0.0
      %383 = vmatpush.msra.mxu0 %v364
      %384 = vmatmul.f32.gmra.mxu0 %v362
      %v385 = vpop.f32.mrf.mxu0
      %v386 = vadd.f32 %v335, %v385
      %387 = vdwg.mxu0
      %388 = vmatpush.msra.mxu0 0.0
      %389 = vmatpush.msra.mxu0 0.0
      %390 = vmatpush.msra.mxu0 0.0
      %391 = vmatpush.msra.mxu0 0.0
      %392 = vmatpush.msra.mxu0 0.0
      %393 = vmatpush.msra.mxu0 0.0
      %394 = vmatpush.msra.mxu0 0.0
      %395 = vmatpush.msra.mxu0 0.0
      %396 = vmatpush.msra.mxu0 0.0
      %397 = vmatpush.msra.mxu0 0.0
      %398 = vmatpush.msra.mxu0 0.0
      %399 = vmatpush.msra.mxu0 0.0
      %400 = vmatpush.msra.mxu0 0.0
      %401 = vmatpush.msra.mxu0 0.0
      %402 = vmatpush.msra.mxu0 0.0
      %403 = vmatpush.msra.mxu0 %v366
      %404 = vmatmul.f32.gmra.mxu0 %v362
      %v405 = vpop.f32.mrf.mxu0
      %v406 = vadd.f32 %v355, %v405
      %407 = vdwg.mxu0
      %v408 = vld [vmem:[%s4] sm:$0xf]
      %410 = vset.pattern.permute.xlu0 0
      %411 = vperm.xlu0 %410, %v408
      %v412 = vpop.permute.xlu0 %411
      %v414 = vadd.f32 %v386, %v412
      %v415 = vadd.f32 %v406, %v412
      %vm416 = vcmp.ge.f32.partialorder %v414, 0.0
      %vm417 = vcmp.ge.f32.partialorder %v415, 0.0
      %v418 = vmul.f32 %v414, 0.2
      %v419 = vmul.f32 %v415, 0.2
      %v420 = vsel %vm416, %v414, %v418
      %v421 = vsel %vm417, %v415, %v419
      %v424 = vrot.slane %v421, 4
      %vm425 = vcmask 1043456
      %v426 = vsel %vm425, %v420, %v424
      %vm428 = vcmask 130052
      %vm429 = vmor %vm428, %vm425
      %430 = vst.msk [vmem:[%s298] sm:$0xff] %vm429, %v426
      %s431 = smul.u32 2, %s21
      %p432 = scmp.lt.s32.totalorder %s20, 1
      %s433 = scalar_select %p432, %s20, 1
      %p434 = scmp.lt.s32.totalorder %s431, 1
      %s435 = scalar_select %p434, %s431, 1
      %s436 = smul.addr %s433, 2
      %s437 = sadd.s32 %s435, %s436
      %s438 = smul.addr %s437, 4
      %s439 = scalar_lea.vmem %s5, %s438
      // Predicated region
      $region41: #{spectral_transform.4} parent=39 // pred_check
        %p440 = pneg %p167
      $region42: #{spectral_transform.4} parent=39 // pred_check_branch
        %442 = sbr.rel (%p440) target = $region44
      $region43: #{spectral_transform.4} parent=39 // pred_region
        %s443 = smul.u32 2, %s21
      $region44: #{spectral_transform.4} parent=39 // pred_fallthru
        _
    $region40: #{spectral_transform.4} parent=5 // pred_fallthru
      _
    %p444 = scmp.le.s32.totalorder 2, %s11
    // Predicated region
    $region45: #{spectral_transform.4} parent=5 // pred_check
      %p445 = pneg %p444
    $region46: #{spectral_transform.4} parent=5 // pred_check_branch
      %447 = sbr.rel (%p445) target = $region48
    $region47: #{spectral_transform.4} parent=5 // pred_region
      %s448 = ssub.s32 %s11, 2
      // Predicated region
      $region49: #{spectral_transform.4} parent=47 // pred_check
        %p449 = pneg %p173
      $region50: #{spectral_transform.4} parent=47 // pred_check_branch
        %451 = sbr.rel (%p449) target = $region52
      $region51: #{spectral_transform.4} parent=47 // pred_region
        %s452 = smul.u32 2, %s23
        %p453 = scmp.lt.s32.totalorder %s22, 1
        %s454 = scalar_select %p453, %s22, 1
        %p455 = scmp.lt.s32.totalorder %s452, 1
        %s456 = scalar_select %p455, %s452, 1
        %s457 = smul.addr %s454, 2
        %s458 = sadd.s32 %s456, %s457
        %s459 = smul.addr %s458, 4
        %s460 = scalar_lea.vmem %s5, %s459
      $region52: #{spectral_transform.4} parent=47 // pred_fallthru
        _
    $region48: #{spectral_transform.4} parent=5 // pred_fallthru
      _
  $region6: #{spectral_transform.4} parent=0 // loop_footer
    %s15 = sadd.s32 1, %s11
  $region7: #{spectral_transform.4} parent=0 // loop_footer_branch
    %10 = sbr.rel target = $region3
  $region8: #{spectral_transform.4} parent=0 // loop_exit
    _

// kernel: spectral_transform.5
$region0: #{spectral_transform.5}
  #allocation0 [shape = 'u32[]', space=smem, size = 0x4, offset = 0x4, fixed_abs, tag = 'smem constant byte address 0x4 - core index']
  #allocation1 [shape = 'u32[72,128]{1,0:T(1,128)}', space=vmem, size = 0x9000, scoped, tag = 'internal scratch']
  %s0 = inlined_call_operand.vmem [shape: f32[2,2,256], index: 0, kind: input, shape index: {}]
  %s1 = inlined_call_operand.vmem [shape: f32[2,2,256], index: 1, kind: input, shape index: {}]
  %s2 = inlined_call_operand.vmem [shape: f32[4,2], index: 2, kind: input, shape index: {}]
  %s3 = inlined_call_operand.vmem [shape: f32[4,1], index: 3, kind: input, shape index: {}]
  %s4 = inlined_call_operand.vmem [shape: f32[2,4,256], index: 4, kind: output, shape index: {}]
  %s5 = sld [smem:[#allocation0]]
  $region49: #{spectral_transform.5} parent=0
    _
  %s7 = ssub.s32 1, %s5
  %s8 = scalar_select 0, %s7, %s5
  loop: start=0, step=1, limit=4
  $region2: #{spectral_transform.5} parent=0 // loop_pre_header
    _
  $region3: #{spectral_transform.5} parent=0 // loop_header
    %s10 = sphi 0, %s14
    %p11 = scmp.ge.s32.totalorder %s10, 4
    %s17 = sphi 0, %s29
    %s18 = sphi 0, %s25
    %s19 = sphi 0, %s17
    %s20 = sphi 0, %s18
    %s21 = sphi 0, %s19
    %s22 = sphi 0, %s20
    %s34 = sphi 0, %s36
    %s37 = sphi 0, %s34
    %s38 = sphi 0, %s37
    %s54 = sphi 0, %s38
    %s62 = sphi 0, %s64
    %s65 = sphi 0, %s62
    %s66 = sphi 0, %s65
    %s82 = sphi 0, %s66
    %s86 = sphi 0, %s86
    %s88 = sphi 0, %s86
    %s89 = sphi 0, %s88
    %s103 = sphi 0, %s89
    %s107 = sphi 0, %s107
    %s109 = sphi 0, %s107
    %s110 = sphi 0, %s109
    %s124 = sphi 0, %s110
    %s132 = sphi 0, %s134
    %s135 = sphi 0, %s132
    %s136 = sphi 0, %s135
    %s152 = sphi 0, %s136
  $region4: #{spectral_transform.5} parent=0 // loop_header_branch
    %13 = sbr.rel (%p11) target = $region8
  $region5: #{spectral_transform.5} parent=0 // loop_body
    %s15 = ssub.s32 %s10, 1
    %s16 = ssub.s32 %s10, 2
    %s23 = sadd.s32 1, %s18
    %p24 = scmp.ge.s32.totalorder %s23, 1
    %s25 = scalar_select %p24, 0, %s23
    %s26 = sadd.s32 1, %s17
    %s27 = scalar_select %p24, %s26, %s17
    %p28 = scmp.ge.s32.totalorder %s27, 2
    %s29 = scalar_select %p28, 0, %s27
    %s30 = ssub.s32 %s17, %s29
    %s31 = ssub.s32 %s18, %s25
    %s32 = sor.u32 %s30, %s31
    %p33 = scmp.eq.s32.totalorder %s32, 0
    %s35 = sadd.s32 %s34, 1
    %s36 = scalar_select %p33, %s34, %s35
    %p39 = pneg %p33
    %p40 = scmp.eq.s32.totalorder %s10, 1
    %p41 = por %p39, %p40
    %p42 = scmp.ne.s32.totalorder %s34, %s37
    %p43 = scmp.eq.s32.totalorder %s10, 0
    %p44 = por %p42, %p43
    %p45 = scmp.ne.s32.totalorder %s34, %s37
    %p46 = scmp.eq.s32.totalorder %s15, 1
    %p47 = por %p45, %p46
    %p48 = scmp.ne.s32.totalorder %s37, %s38
    %p49 = scmp.eq.s32.totalorder %s15, 0
    %p50 = por %p48, %p49
    %p51 = scmp.ne.s32.totalorder %s37, %s38
    %p52 = scmp.eq.s32.totalorder %s16, 1
    %p53 = por %p51, %p52
    %p55 = scmp.ne.s32.totalorder %s38, %s54
    %p56 = scmp.eq.s32.totalorder %s16, 0
    %p57 = por %p55, %p56
    %s58 = ssub.s32 %s17, %s29
    %s59 = ssub.s32 %s18, %s25
    %s60 = sor.u32 %s58, %s59
    %p61 = scmp.eq.s32.totalorder %s60, 0
    %s63 = sadd.s32 %s62, 1
    %s64 = scalar_select %p61, %s62, %s63
    %p67 = pneg %p61
    %p68 = scmp.eq.s32.totalorder %s10, 1
    %p69 = por %p67, %p68
    %p70 = scmp.ne.s32.totalorder %s62, %s65
    %p71 = scmp.eq.s32.totalorder %s10, 0
    %p72 = por %p70, %p71
    %p73 = scmp.ne.s32.totalorder %s62, %s65
    %p74 = scmp.eq.s32.totalorder %s15, 1
    %p75 = por %p73, %p74
    %p76 = scmp.ne.s32.totalorder %s65, %s66
    %p77 = scmp.eq.s32.totalorder %s15, 0
    %p78 = por %p76, %p77
    %p79 = scmp.ne.s32.totalorder %s65, %s66
    %p80 = scmp.eq.s32.totalorder %s16, 1
    %p81 = por %p79, %p80
    %p83 = scmp.ne.s32.totalorder %s66, %s82
    %p84 = scmp.eq.s32.totalorder %s16, 0
    %p85 = por %p83, %p84
    %s87 = sadd.s32 %s86, 1
    %p90 = scmp.eq.s32.totalorder %s10, 1
    %p91 = scmp.ne.s32.totalorder %s86, %s88
    %p92 = scmp.eq.s32.totalorder %s10, 0
    %p93 = por %p91, %p92
    %p94 = scmp.ne.s32.totalorder %s86, %s88
    %p95 = scmp.eq.s32.totalorder %s15, 1
    %p96 = por %p94, %p95
    %p97 = scmp.ne.s32.totalorder %s88, %s89
    %p98 = scmp.eq.s32.totalorder %s15, 0
    %p99 = por %p97, %p98
    %p100 = scmp.ne.s32.totalorder %s88, %s89
    %p101 = scmp.eq.s32.totalorder %s16, 1
    %p102 = por %p100, %p101
    %p104 = scmp.ne.s32.totalorder %s89, %s103
    %p105 = scmp.eq.s32.totalorder %s16, 0
    %p106 = por %p104, %p105
    %s108 = sadd.s32 %s107, 1
    %p111 = scmp.eq.s32.totalorder %s10, 1
    %p112 = scmp.ne.s32.totalorder %s107, %s109
    %p113 = scmp.eq.s32.totalorder %s10, 0
    %p114 = por %p112, %p113
    %p115 = scmp.ne.s32.totalorder %s107, %s109
    %p116 = scmp.eq.s32.totalorder %s15, 1
    %p117 = por %p115, %p116
    %p118 = scmp.ne.s32.totalorder %s109, %s110
    %p119 = scmp.eq.s32.totalorder %s15, 0
    %p120 = por %p118, %p119
    %p121 = scmp.ne.s32.totalorder %s109, %s110
    %p122 = scmp.eq.s32.totalorder %s16, 1
    %p123 = por %p121, %p122
    %p125 = scmp.ne.s32.totalorder %s110, %s124
    %p126 = scmp.eq.s32.totalorder %s16, 0
    %p127 = por %p125, %p126
    %s128 = ssub.s32 %s17, %s29
    %s129 = ssub.s32 %s18, %s25
    %s130 = sor.u32 %s128, %s129
    %p131 = scmp.eq.s32.totalorder %s130, 0
    %s133 = sadd.s32 %s132, 1
    %s134 = scalar_select %p131, %s132, %s133
    %p137 = pneg %p131
    %p138 = scmp.eq.s32.totalorder %s10, 1
    %p139 = por %p137, %p138
    %p140 = scmp.ne.s32.totalorder %s132, %s135
    %p141 = scmp.eq.s32.totalorder %s10, 0
    %p142 = por %p140, %p141
    %p143 = scmp.ne.s32.totalorder %s132, %s135
    %p144 = scmp.eq.s32.totalorder %s15, 1
    %p145 = por %p143, %p144
    %p146 = scmp.ne.s32.totalorder %s135, %s136
    %p147 = scmp.eq.s32.totalorder %s15, 0
    %p148 = por %p146, %p147
    %p149 = scmp.ne.s32.totalorder %s135, %s136
    %p150 = scmp.eq.s32.totalorder %s16, 1
    %p151 = por %p149, %p150
    %p153 = scmp.ne.s32.totalorder %s136, %s152
    %p154 = scmp.eq.s32.totalorder %s16, 0
    %p155 = por %p153, %p154
    %p156 = scmp.le.s32.totalorder 1, %s10
    %p157 = scmp.lt.s32.totalorder %s10, 3
    %p158 = pnand %p156, %p157
    %p159 = pneg %p158
    // Predicated region
    $region9: #{spectral_transform.5} parent=5 // pred_check
      _
    $region10: #{spectral_transform.5} parent=5 // pred_check_branch
      %161 = sbr.rel (%p158) target = $region12
    $region11: #{spectral_transform.5} parent=5 // pred_region
      %s162 = ssub.s32 %s10, 1
      // Predicated region
      $region13: #{spectral_transform.5} parent=11 // pred_check
        %p163 = pneg %p99
      $region14: #{spectral_transform.5} parent=11 // pred_check_branch
        %165 = sbr.rel (%p163) target = $region16
      $region15: #{spectral_transform.5} parent=11 // pred_region
        _
      $region16: #{spectral_transform.5} parent=11 // pred_fallthru
        _
      // Predicated region
      $region17: #{spectral_transform.5} parent=11 // pred_check
        %p166 = pneg %p120
      $region18: #{spectral_transform.5} parent=11 // pred_check_branch
        %168 = sbr.rel (%p166) target = $region20
      $region19: #{spectral_transform.5} parent=11 // pred_region
        _
      $region20: #{spectral_transform.5} parent=11 // pred_fallthru
        _
    $region12: #{spectral_transform.5} parent=5 // pred_fallthru
      _
    %p169 = scmp.lt.s32.totalorder %s10, 2
    // Predicated region
    $region21: #{spectral_transform.5} parent=5 // pred_check
      %p170 = pneg %p169
    $region22: #{spectral_transform.5} parent=5 // pred_check_branch
      %172 = sbr.rel (%p170) target = $region24
    $region23: #{spectral_transform.5} parent=5 // pred_region
      // Predicated region
      $region25: #{spectral_transform.5} parent=23 // pred_check
        %p173 = pneg %p44
      $region26: #{spectral_transform.5} parent=23 // pred_check_branch
        %175 = sbr.rel (%p173) target = $region28
      $region27: #{spectral_transform.5} parent=23 // pred_region
        %s176 = smul.u32 2, %s18
        %p177 = scmp.lt.s32.totalorder %s17, 1
        %s178 = scalar_select %p177, %s17, 1
        %p179 = scmp.lt.s32.totalorder %s176, 1
        %s180 = scalar_select %p179, %s176, 1
        %s181 = smul.addr %s178, 2
        %s182 = sadd.s32 %s180, %s181
        %s183 = smul.addr %s182, 2
        %s184 = scalar_lea.vmem %s0, %s183
        %s185 = smul.u32 2, %s18
      $region28: #{spectral_transform.5} parent=23 // pred_fallthru
        _
      // Predicated region
      $region29: #{spectral_transform.5} parent=23 // pred_check
        %p186 = pneg %p72
      $region30: #{spectral_transform.5} parent=23 // pred_check_branch
        %188 = sbr.rel (%p186) target = $region32
      $region31: #{spectral_transform.5} parent=23 // pred_region
        %s189 = smul.u32 2, %s18
        %p190 = scmp.lt.s32.totalorder %s17, 1
        %s191 = scalar_select %p190, %s17, 1
        %p192 = scmp.lt.s32.totalorder %s189, 1
        %s193 = scalar_select %p192, %s189, 1
        %s194 = smul.addr %s191, 2
        %s195 = sadd.s32 %s193, %s194
        %s196 = smul.addr %s195, 2
        %s197 = scalar_lea.vmem %s1, %s196
        %s198 = smul.u32 2, %s18
      $region32: #{spectral_transform.5} parent=23 // pred_fallthru
        _
    $region24: #{spectral_transform.5} parent=5 // pred_fallthru
      _
    %p199 = scmp.le.s32.totalorder 1, %s10
    %p200 = scmp.lt.s32.totalorder %s10, 3
    %p201 = pnand %p199, %p200
    %p202 = pneg %p201
    // Predicated region
    $region33: #{spectral_transform.5} parent=5 // pred_check
      _
    $region34: #{spectral_transform.5} parent=5 // pred_check_branch
      %204 = sbr.rel (%p201) target = $region36
    $region35: #{spectral_transform.5} parent=5 // pred_region
      %s205 = ssub.s32 %s10, 1
      %s206 = smul.u32 2, %s20
      %p207 = scmp.lt.s32.totalorder %s19, 1
      %s208 = scalar_select %p207, %s19, 1
      %p209 = scmp.lt.s32.totalorder %s206, 1
      %s210 = scalar_select %p209, %s206, 1
      %s211 = smul.addr %s208, 2
      %s212 = sadd.s32 %s210, %s211
      %s213 = smul.addr %s212, 2
      %s214 = scalar_lea.vmem %s0, %s213
      %p215 = pneg %p50
      %p216 = pneg %p47
      %s217 = smul.u32 2, %s20
      %p218 = scmp.lt.s32.totalorder %s19, 1
      %s219 = scalar_select %p218, %s19, 1
      %p220 = scmp.lt.s32.totalorder %s217, 1
      %s221 = scalar_select %p220, %s217, 1
      %s222 = smul.addr %s219, 2
      %s223 = sadd.s32 %s221, %s222
      %s224 = smul.addr %s223, 2
      %s225 = scalar_lea.vmem %s1, %s224
      %p226 = pneg %p78
      %p227 = pneg %p75
      %p228 = pneg %p99
      %p229 = pneg %p96
      %p230 = pneg %p120
      %p231 = pneg %p117
      %p232 = pneg %p148
      %p233 = pneg %p145
      %s234 = smul.u32 2, %s20
      %p235 = scmp.lt.s32.totalorder %s19, 1
      %s236 = scalar_select %p235, %s19, 1
      %p237 = scmp.lt.s32.totalorder %s234, 1
      %s238 = scalar_select %p237, %s234, 1
      %s239 = smul.addr %s236, 2
      %s240 = sadd.s32 %s238, %s239
      %s241 = smul.addr %s240, 4
      %s242 = scalar_lea.vmem %s4, %s241
      %s243 = smul.u32 2, %s20
      %p244 = scmp.lt.s32.totalorder %s19, 1
      %s245 = scalar_select %p244, %s19, 1
      %p246 = scmp.lt.s32.totalorder %s243, 1
      %s247 = scalar_select %p246, %s243, 1
      %s248 = smul.addr %s245, 2
      %s249 = sadd.s32 %s247, %s248
      %s250 = smul.addr %s249, 2
      %s251 = scalar_lea.vmem %s0, %s250
      %s252 = smul.u32 2, %s20
      %s253 = smul.u32 2, %s20
      %p254 = scmp.lt.s32.totalorder %s19, 1
      %s255 = scalar_select %p254, %s19, 1
      %p256 = scmp.lt.s32.totalorder %s253, 1
      %s257 = scalar_select %p256, %s253, 1
      %s258 = smul.addr %s255, 2
      %s259 = sadd.s32 %s257, %s258
      %s260 = smul.addr %s259, 2
      %s261 = scalar_lea.vmem %s1, %s260
      %s262 = smul.u32 2, %s20
      %s263 = smul.u32 2, %s20
      %p264 = scmp.lt.s32.totalorder %s19, 1
      %s265 = scalar_select %p264, %s19, 1
      %p266 = scmp.lt.s32.totalorder %s263, 1
      %s267 = scalar_select %p266, %s263, 1
      %s268 = smul.addr %s265, 2
      %s269 = sadd.s32 %s267, %s268
      %s270 = smul.addr %s269, 4
      %s271 = scalar_lea.vmem %s4, %s270
      %s272 = smul.u32 2, %s20
      %v273 = vld [vmem:[%s2] sm:$0xf]
      %v274 = vld [vmem:[%s251] sm:$0xf]
      %v275 = vld [vmem:[%s261] sm:$0xf]
      %v276 = vadd.f32 %v274, %v275
      %v277 = vld [vmem:[%s3] sm:$0xf]
      %279 = vset.pattern.permute.xlu0 0
      %280 = vperm.xlu0 %279, %v277
      %v281 = vpop.permute.xlu0 %280
      %284 = vst [vmem:[#allocation1] ss:$4 sm:$0xff] %v276
      %v285 = vld.sshfl [vmem:[#allocation1] sm:$0xff pattern:$0x73625140]
      %v286 = vld.sshfl [vmem:[#allocation1 + $0x8] sm:$0xff pattern:$0x73625140]
      %vm287 = vcmask 15360
      %v289 = vsel %vm287, %v273, 0
      %vm291 = vcmask 1041408
      %v292 = vsel %vm291, %v285, 0
      %v294 = vsel %vm291, %v286, 0
      %296 = vmatpush.msra.mxu0 0.0
      %297 = vmatpush.msra.mxu0 0.0
      %298 = vmatpush.msra.mxu0 0.0
      %299 = vmatpush.msra.mxu0 0.0
      %300 = vmatpush.msra.mxu0 0.0
      %301 = vmatpush.msra.mxu0 0.0
      %302 = vmatpush.msra.mxu0 0.0
      %303 = vmatpush.msra.mxu0 0.0
      %304 = vmatpush.msra.mxu0 0.0
      %305 = vmatpush.msra.mxu0 0.0
      %306 = vmatpush.msra.mxu0 0.0
      %307 = vmatpush.msra.mxu0 0.0
      %308 = vmatpush.msra.mxu0 0.0
      %309 = vmatpush.msra.mxu0 0.0
      %310 = vmatpush.msra.mxu0 0.0
      %311 = vmatpush.msra.mxu0 %v292
      %312 = vmatmul.f32.gmra.mxu0 %v289
      %v313 = vpop.f32.mrf.mxu0
      %v314 = vadd.f32 %v281, %v313
      %315 = vdwg.mxu0
      %316 = vmatpush.msra.mxu0 0.0
      %317 = vmatpush.msra.mxu0 0.0
      %318 = vmatpush.msra.mxu0 0.0
      %319 = vmatpush.msra.mxu0 0.0
      %320 = vmatpush.msra.mxu0 0.0
      %321 = vmatpush.msra.mxu0 0.0
      %322 = vmatpush.msra.mxu0 0.0
      %323 = vmatpush.msra.mxu0 0.0
      %324 = vmatpush.msra.mxu0 0.0
      %325 = vmatpush.msra.mxu0 0.0
      %326 = vmatpush.msra.mxu0 0.0
      %327 = vmatpush.msra.mxu0 0.0
      %328 = vmatpush.msra.mxu0 0.0
      %329 = vmatpush.msra.mxu0 0.0
      %330 = vmatpush.msra.mxu0 0.0
      %331 = vmatpush.msra.mxu0 %v294
      %332 = vmatmul.f32.gmra.mxu0 %v289
      %v333 = vpop.f32.mrf.mxu0
      %v334 = vadd.f32 %v281, %v333
      %335 = vdwg.mxu0
      %v338 = vrot.slane %v334, 4
      %vm339 = vcmask 1043456
      %v340 = vsel %vm339, %v314, %v338
      %342 = vst [vmem:[%s271] sm:$0xff] %v340
      %s343 = smul.u32 2, %s20
      %p344 = scmp.lt.s32.totalorder %s19, 1
      %s345 = scalar_select %p344, %s19, 1
      %p346 = scmp.lt.s32.totalorder %s343, 1
      %s347 = scalar_select %p346, %s343, 1
      %s348 = smul.addr %s345, 2
      %s349 = sadd.s32 %s347, %s348
      %s350 = smul.addr %s349, 4
      %s351 = scalar_lea.vmem %s4, %s350
      // Predicated region
      $region37: #{spectral_transform.5} parent=35 // pred_check
        %p352 = pneg %p145
      $region38: #{spectral_transform.5} parent=35 // pred_check_branch
        %354 = sbr.rel (%p352) target = $region40
      $region39: #{spectral_transform.5} parent=35 // pred_region
        %s355 = smul.u32 2, %s20
      $region40: #{spectral_transform.5} parent=35 // pred_fallthru
        _
    $region36: #{spectral_transform.5} parent=5 // pred_fallthru
      _
    %p356 = scmp.le.s32.totalorder 2, %s10
    // Predicated region
    $region41: #{spectral_transform.5} parent=5 // pred_check
      %p357 = pneg %p356
    $region42: #{spectral_transform.5} parent=5 // pred_check_branch
      %359 = sbr.rel (%p357) target = $region44
    $region43: #{spectral_transform.5} parent=5 // pred_region
      %s360 = ssub.s32 %s10, 2
      // Predicated region
      $region45: #{spectral_transform.5} parent=43 // pred_check
        %p361 = pneg %p151
      $region46: #{spectral_transform.5} parent=43 // pred_check_branch
        %363 = sbr.rel (%p361) target = $region48
      $region47: #{spectral_transform.5} parent=43 // pred_region
        %s364 = smul.u32 2, %s22
        %p365 = scmp.lt.s32.totalorder %s21, 1
        %s366 = scalar_select %p365, %s21, 1
        %p367 = scmp.lt.s32.totalorder %s364, 1
        %s368 = scalar_select %p367, %s364, 1
        %s369 = smul.addr %s366, 2
        %s370 = sadd.s32 %s368, %s369
        %s371 = smul.addr %s370, 4
        %s372 = scalar_lea.vmem %s4, %s371
      $region48: #{spectral_transform.5} parent=43 // pred_fallthru
        _
    $region44: #{spectral_transform.5} parent=5 // pred_fallthru
      _
  $region6: #{spectral_transform.5} parent=0 // loop_footer
    %s14 = sadd.s32 1, %s10
  $region7: #{spectral_transform.5} parent=0 // loop_footer_branch
    %9 = sbr.rel target = $region3
  $region8: #{spectral_transform.5} parent=0 // loop_exit
    _

</llo_original>
